<compile_context>
chip_gen: v7x
topology: tpu7x:2x2x1
jax: 0.10.0
libtpu: 0.0.40
codegen_flags: <defaults>
</compile_context>

<pallas_src>
import functools

import jax
import jax.numpy as jnp
from jax import lax
from jax.experimental import pallas as pl
from jax.experimental.pallas import tpu as pltpu


def _round_up(v, m):
    return (v + m - 1) // m * m


def _head_kernel(x_ref, w1_ref, b1_ref, w2_ref, out_ref, *, inv_temp, eps):
    # x_ref : (TN, Dp)  bf16 row tile of backbone features
    # w1_ref: (Dp, Hp)  bf16 fc1 weight, pre-transposed (+padded), VMEM-resident
    # b1_ref: (1,  Hp)  f32  fc1 bias
    # w2_ref: (Hp, Cp)  bf16 fc2 weight, pre-transposed + class-padded (lane-dense)
    # out_ref:(TN, Cp)  f32  logits tile

    # fc1: native-rate bf16 MXU matmul with f32 accumulation.
    h = jnp.dot(x_ref[...], w1_ref[...], preferred_element_type=jnp.float32)
    h = h + b1_ref[...]

    # F.normalize(dim=1) / temp == h * (rsqrt(max(||h||^2, eps^2)) * (1/temp)).
    # Kept in f32; rsqrt runs on the EUP slot, 1/temp folded into the same scale.
    ssq = jnp.sum(h * h, axis=1, keepdims=True)
    scale = lax.rsqrt(jnp.maximum(ssq, eps * eps)) * inv_temp
    h = h * scale

    # fc2 (no bias): cast to bf16 only at the MXU boundary, f32 accumulate.
    out_ref[...] = jnp.dot(
        h.astype(w2_ref.dtype), w2_ref[...], preferred_element_type=jnp.float32
    ).astype(out_ref.dtype)


def prepare_head_params(fc1_w, fc1_b, fc2_w, *, compute_dtype=jnp.bfloat16):
    """One-time prep of the classifier-head weights (hoisted out of the hot path).

    fc1_w: (H, D)  torch nn.Linear weight layout
    fc1_b: (H,)    torch nn.Linear bias
    fc2_w: (C, H)  torch nn.Linear weight (bias=False)
    Returns MXU-ready (transposed, 128-padded where needed, bf16) parameters.
    """
    H, D = fc1_w.shape
    C, H2 = fc2_w.shape
    assert H == H2, "fc1 output dim must match fc2 input dim"

    Dp, Hp, Cp = (_round_up(v, 128) for v in (D, H, C))

    w1 = fc1_w.T.astype(compute_dtype)                      # (D, H), hoisted transpose
    if (Dp, Hp) != (D, H):                                  # no-op for D = H = 512
        w1 = jnp.zeros((Dp, Hp), compute_dtype).at[:D, :H].set(w1)

    b1 = fc1_b.astype(jnp.float32).reshape(1, H)            # bias kept f32
    if Hp != H:
        b1 = jnp.zeros((1, Hp), jnp.float32).at[:, :H].set(b1)

    w2 = fc2_w.T.astype(compute_dtype)                      # (H, C), hoisted transpose
    if (Hp, Cp) != (H, C):                                  # only C: 65 -> 128
        w2 = jnp.zeros((Hp, Cp), compute_dtype).at[:H, :C].set(w2)

    return {"w1": w1, "b1": b1, "w2": w2, "in_dim": D, "num_classes": C}


def res_model_head_forward(feats, params, temp=0.05, *, tile_n=None):
    """Classifier head of ResModel: fc2( normalize(fc1(feats), dim=1) / temp ).

    feats: (N, D) backbone features; params: output of prepare_head_params().
    Returns (N, C) logits in float32.
    """
    N, D = feats.shape
    assert D == params["in_dim"], "feature dim must match fc1 input dim"
    w1, b1, w2 = params["w1"], params["b1"], params["w2"]
    Dp, Hp = w1.shape
    Cp = w2.shape[1]
    C = params["num_classes"]

    if tile_n is None:
        # Two row tiles by default: v7x's dual TensorCores each take one via
        # dimension_semantics=("parallel",); on single-TC v5e/v6e the extra grid
        # step only costs ~0.35 us. Cap at 256 rows so tiles stay tiny in VMEM.
        tile_n = max(8, -(-N // 2))
    # Sublane-safe (multiple of 16 for packed bf16 rows), robust to any tile_n.
    TN = min(256, _round_up(min(tile_n, N), 16))
    Np = _round_up(N, TN)

    # Cast activations to bf16 for native MXU rate; pad only if actually needed
    # (zero-padded rows/cols are exact: they contribute 0 to matmuls and norms).
    x = feats.astype(w1.dtype)
    if (Np, Dp) != (N, D):
        x = jnp.zeros((Np, Dp), w1.dtype).at[:N, :D].set(x)

    kernel = functools.partial(_head_kernel, inv_temp=float(1.0 / temp), eps=1e-12)

    out = pl.pallas_call(
        kernel,
        out_shape=jax.ShapeDtypeStruct((Np, Cp), jnp.float32),
        grid=(Np // TN,),
        in_specs=[
            pl.BlockSpec((TN, Dp), lambda i: (i, 0)),   # pipelined row tiles of x
            pl.BlockSpec((Dp, Hp), lambda i: (0, 0)),   # constant index: weights stay
            pl.BlockSpec((1, Hp), lambda i: (0, 0)),    # VMEM-resident, DMA'd once
            pl.BlockSpec((Hp, Cp), lambda i: (0, 0)),
        ],
        out_specs=pl.BlockSpec((TN, Cp), lambda i: (i, 0)),  # lane-dense (Cp=128k) stores
        compiler_params=pltpu.CompilerParams(
            dimension_semantics=("parallel",),          # megacore-shard row tiles
            vmem_limit_bytes=8 * 1024 * 1024,           # actual footprint < 4 MiB
        ),
    )(x, w1, b1, w2)

    return out[:N, :C]


def _reference(feats, fc1_w, fc1_b, fc2_w, temp=0.05):
    # Pure-JAX f32 mirror of Classifier.forward (torch semantics).
    h = feats @ fc1_w.T + fc1_b
    norm = jnp.maximum(jnp.linalg.norm(h, axis=1, keepdims=True), 1e-12)
    h = (h / norm) / temp
    return h @ fc2_w.T


if __name__ == "__main__":
    key = jax.random.PRNGKey(0)
    kx, k1, kb, k2 = jax.random.split(key, 4)

    # Shapes implied by the module: resnet34 feature dim 512, hidden 512, 65 classes.
    N, D, H, C = 64, 512, 512, 65
    temp = 0.05

    feats = jax.random.normal(kx, (N, D), dtype=jnp.float32)
    fc1_w = jax.random.normal(k1, (H, D), dtype=jnp.float32) * jnp.sqrt(2.0 / (H + D))
    fc1_b = jax.random.normal(kb, (H,), dtype=jnp.float32) * 0.01
    fc2_w = jax.random.normal(k2, (C, H), dtype=jnp.float32) * jnp.sqrt(2.0 / (C + H))

    # One-time weight prep (outside the hot path).
    params = jax.block_until_ready(prepare_head_params(fc1_w, fc1_b, fc2_w))

    out = res_model_head_forward(feats, params, temp)
    out = jax.block_until_ready(out)

    ref = _reference(feats, fc1_w, fc1_b, fc2_w, temp)
    assert out.shape == (N, C)
    assert jnp.allclose(out, ref, atol=2e-2, rtol=2e-2), "mismatch vs reference"

    print("KERNEL_OK")
</pallas_src>

<mosaic_0001>
module attributes {stable_mosaic.version = 11 : i64} {
  func.func @_head_kernel(%arg0: i32, %arg1: memref<32x512xbf16, #tpu.memory_space<vmem>>, %arg2: memref<512x512xbf16, #tpu.memory_space<vmem>>, %arg3: memref<1x512xf32, #tpu.memory_space<vmem>>, %arg4: memref<512x128xbf16, #tpu.memory_space<vmem>>, %arg5: memref<32x128xf32, #tpu.memory_space<vmem>>) attributes {dimension_semantics = [#tpu.dimension_semantics<parallel>], iteration_bounds = array<i64: 2>, scalar_prefetch = 0 : i64, scratch_operands = 0 : i64, tpu.core_type = #tpu.core_type<tc>, window_params = [{transform_indices = @transform_0, window_bounds = array<i64: 32, 512>}, {pipeline_mode = #tpu.pipeline_mode<synchronous>, transform_indices = @transform_1, window_bounds = array<i64: 512, 512>}, {pipeline_mode = #tpu.pipeline_mode<synchronous>, transform_indices = @transform_2, window_bounds = array<i64: 1, 512>}, {pipeline_mode = #tpu.pipeline_mode<synchronous>, transform_indices = @transform_3, window_bounds = array<i64: 512, 128>}, {transform_indices = @transform_4, window_bounds = array<i64: 32, 128>}]} {
    %c0 = arith.constant 0 : index
    %c0_0 = arith.constant 0 : index
    %0 = vector.load %arg1[%c0, %c0_0] : memref<32x512xbf16, #tpu.memory_space<vmem>>, vector<32x512xbf16>
    %c0_1 = arith.constant 0 : index
    %c0_2 = arith.constant 0 : index
    %1 = vector.load %arg2[%c0_1, %c0_2] : memref<512x512xbf16, #tpu.memory_space<vmem>>, vector<512x512xbf16>
    %cst = arith.constant dense<0.000000e+00> : vector<32x512xf32>
    %2 = tpu.matmul %0, %1, %cst {dimension_numbers = #tpu.dot_dimension_numbers<[1], [0], [0], [1], [0, 0, 1, 1], [], []>} : vector<32x512xbf16>, vector<512x512xbf16>, vector<32x512xf32> -> vector<32x512xf32>
    %c0_3 = arith.constant 0 : index
    %c0_4 = arith.constant 0 : index
    %3 = vector.load %arg3[%c0_3, %c0_4] : memref<1x512xf32, #tpu.memory_space<vmem>>, vector<1x512xf32>
    %4 = vector.broadcast %3 : vector<1x512xf32> to vector<32x512xf32>
    %5 = arith.addf %2, %4 : vector<32x512xf32>
    %6 = arith.mulf %5, %5 : vector<32x512xf32>
    %cst_5 = arith.constant dense<0.000000e+00> : vector<32xf32>
    %7 = vector.multi_reduction <add>, %6, %cst_5 [1] : vector<32x512xf32> to vector<32xf32>
    %8 = vector.shape_cast %7 : vector<32xf32> to vector<32x1xf32>
    %cst_6 = arith.constant 1.000000e-24 : f32
    %9 = vector.broadcast %cst_6 : f32 to vector<32x1xf32>
    %10 = arith.maximumf %8, %9 : vector<32x1xf32>
    %11 = math.rsqrt %10 : vector<32x1xf32>
    %cst_7 = arith.constant 2.000000e+01 : f32
    %12 = vector.broadcast %cst_7 : f32 to vector<32x1xf32>
    %13 = arith.mulf %11, %12 : vector<32x1xf32>
    %14 = vector.broadcast %13 : vector<32x1xf32> to vector<32x512xf32>
    %15 = arith.mulf %5, %14 : vector<32x512xf32>
    %16 = arith.truncf %15 : vector<32x512xf32> to vector<32x512xbf16>
    %c0_8 = arith.constant 0 : index
    %c0_9 = arith.constant 0 : index
    %17 = vector.load %arg4[%c0_8, %c0_9] : memref<512x128xbf16, #tpu.memory_space<vmem>>, vector<512x128xbf16>
    %cst_10 = arith.constant dense<0.000000e+00> : vector<32x128xf32>
    %18 = tpu.matmul %16, %17, %cst_10 {dimension_numbers = #tpu.dot_dimension_numbers<[1], [0], [0], [1], [0, 0, 1, 1], [], []>} : vector<32x512xbf16>, vector<512x128xbf16>, vector<32x128xf32> -> vector<32x128xf32>
    %c0_11 = arith.constant 0 : index
    %c0_12 = arith.constant 0 : index
    %19 = vector.load %arg5[%c0_11, %c0_12] : memref<32x128xf32, #tpu.memory_space<vmem>>, vector<32x128xf32>
    tpu.vector_store %arg5[%c0_11, %c0_12], %18 {strides = array<i32>} : memref<32x128xf32, #tpu.memory_space<vmem>>, vector<32x128xf32>,
    return
  }
  func.func @transform_0(%arg0: i32) -> (i32, i32) {
    %c0_i32 = arith.constant 0 : i32
    %c0_i32_0 = arith.constant 0 : i32
    return %arg0, %c0_i32 : i32, i32
  }
  func.func @transform_1(%arg0: i32) -> (i32, i32) {
    %c0_i32 = arith.constant 0 : i32
    %c0_i32_0 = arith.constant 0 : i32
    %c0_i32_1 = arith.constant 0 : i32
    return %c0_i32, %c0_i32_0 : i32, i32
  }
  func.func @transform_2(%arg0: i32) -> (i32, i32) {
    %c0_i32 = arith.constant 0 : i32
    %c0_i32_0 = arith.constant 0 : i32
    %c0_i32_1 = arith.constant 0 : i32
    return %c0_i32, %c0_i32_0 : i32, i32
  }
  func.func @transform_3(%arg0: i32) -> (i32, i32) {
    %c0_i32 = arith.constant 0 : i32
    %c0_i32_0 = arith.constant 0 : i32
    %c0_i32_1 = arith.constant 0 : i32
    return %c0_i32, %c0_i32_0 : i32, i32
  }
  func.func @transform_4(%arg0: i32) -> (i32, i32) {
    %c0_i32 = arith.constant 0 : i32
    %c0_i32_0 = arith.constant 0 : i32
    return %arg0, %c0_i32 : i32, i32
  }
}

</mosaic_0001>

<llo_original>
// kernel: tpu_custom_call.1
$region0: #{tpu_custom_call.1}
  #allocation0 [shape = 'u32[]', space=smem, size = 0x4, offset = 0x4, fixed_abs, tag = 'smem constant byte address 0x4 - core index']
  #allocation1 [shape = 'u32[144,128]{1,0:T(1,128)}', space=vmem, size = 0x12000, scoped, tag = 'internal scratch']
  %s0 = inlined_call_operand.hbm [shape: bf16[64,512], index: 0, kind: input, shape index: {}]
  %s1 = inlined_call_operand.hbm [shape: bf16[512,512], index: 1, kind: input, shape index: {}]
  %s2 = inlined_call_operand.vmem [shape: f32[1,512], index: 2, kind: input, shape index: {}]
  %s3 = inlined_call_operand.hbm [shape: bf16[512,128], index: 3, kind: input, shape index: {}]
  %s4 = inlined_call_operand.hbm [shape: f32[64,128], index: 4, kind: output, shape index: {}]
  %s5 = sld [smem:[#allocation0]]
  $region61: #{tpu_custom_call.1} parent=0
    _
  %s7 = ssub.s32 1, %s5
  %s8 = scalar_select 0, %s7, %s5
  $region1: #{tpu_custom_call.1} parent=0
    #allocation2 [shape = 'u8[65536]{0}', space=vmem, size = 0x10000, scoped, tag = 'input window, operand 0']
    #allocation3 [shape = 's32[2]{0}', space=sflag, size = 0x8, scoped, tag = 'scoped memory for tpu_custom_call.1']
    #allocation4 [shape = 's32[2]{0}', space=sflag, size = 0x8, scoped, tag = 'scoped memory for tpu_custom_call.1']
    #allocation5 [shape = 'u8[524288]{0}', space=vmem, size = 0x80000, scoped, tag = 'input window, operand 1, single buffered']
    #allocation6 [shape = 's32[1]{0}', space=sflag, size = 0x4, scoped, tag = 'scoped memory for tpu_custom_call.1']
    #allocation7 [shape = 'u8[131072]{0}', space=vmem, size = 0x20000, scoped, tag = 'input window, operand 3, single buffered']
    #allocation8 [shape = 'u8[32768]{0}', space=vmem, size = 0x8000, scoped, tag = 'output window, operand 0']
    %9 = vsyncpa [#allocation3], 0
    %s10 = scalar_lea.sflag [#allocation3], 1
    %11 = vsyncpa %s10, 0
    %12 = vsyncpa [#allocation6], 0
    %13 = vsyncpa [#allocation4], 0
    %s14 = scalar_lea.sflag [#allocation4], 1
    %15 = vsyncpa %s14, 0
    loop: start=0, step=1, limit=4
    $region2: #{tpu_custom_call.1} parent=1 // loop_pre_header
      _
    $region3: #{tpu_custom_call.1} parent=1 // loop_header
      %s17 = sphi 0, %s21
      %p18 = scmp.ge.s32.totalorder %s17, 4
      %s27 = sphi 0, %s29
      %s30 = sphi 0, %s27
      %s31 = sphi 0, %s30
      %s47 = sphi 0, %s31
      %s51 = sphi 0, %s51
      %s53 = sphi 0, %s51
      %s54 = sphi 0, %s53
      %s68 = sphi 0, %s54
      %s72 = sphi 0, %s72
      %s74 = sphi 0, %s72
      %s75 = sphi 0, %s74
      %s89 = sphi 0, %s75
      %s93 = sphi 0, %s93
      %s95 = sphi 0, %s93
      %s96 = sphi 0, %s95
      %s110 = sphi 0, %s96
      %s116 = sphi 0, %s118
      %s119 = sphi 0, %s116
      %s120 = sphi 0, %s119
      %s136 = sphi 0, %s120
    $region4: #{tpu_custom_call.1} parent=1 // loop_header_branch
      %20 = sbr.rel (%p18) target = $region8
    $region5: #{tpu_custom_call.1} parent=1 // loop_body
      %s22 = ssub.s32 %s17, 1
      %s23 = ssub.s32 %s17, 2
      %s24 = sadd.s32 %s17, 1
      %s25 = ssub.s32 %s17, %s24
      %p26 = scmp.eq.s32.totalorder %s25, 0
      %s28 = sadd.s32 %s27, 1
      %s29 = scalar_select %p26, %s27, %s28
      %p32 = pneg %p26
      %p33 = scmp.eq.s32.totalorder %s17, 1
      %p34 = por %p32, %p33
      %p35 = scmp.ne.s32.totalorder %s27, %s30
      %p36 = scmp.eq.s32.totalorder %s17, 0
      %p37 = por %p35, %p36
      %p38 = scmp.ne.s32.totalorder %s27, %s30
      %p39 = scmp.eq.s32.totalorder %s22, 1
      %p40 = por %p38, %p39
      %p41 = scmp.ne.s32.totalorder %s30, %s31
      %p42 = scmp.eq.s32.totalorder %s22, 0
      %p43 = por %p41, %p42
      %p44 = scmp.ne.s32.totalorder %s30, %s31
      %p45 = scmp.eq.s32.totalorder %s23, 1
      %p46 = por %p44, %p45
      %p48 = scmp.ne.s32.totalorder %s31, %s47
      %p49 = scmp.eq.s32.totalorder %s23, 0
      %p50 = por %p48, %p49
      %s52 = sadd.s32 %s51, 1
      %p55 = scmp.eq.s32.totalorder %s17, 1
      %p56 = scmp.ne.s32.totalorder %s51, %s53
      %p57 = scmp.eq.s32.totalorder %s17, 0
      %p58 = por %p56, %p57
      %p59 = scmp.ne.s32.totalorder %s51, %s53
      %p60 = scmp.eq.s32.totalorder %s22, 1
      %p61 = por %p59, %p60
      %p62 = scmp.ne.s32.totalorder %s53, %s54
      %p63 = scmp.eq.s32.totalorder %s22, 0
      %p64 = por %p62, %p63
      %p65 = scmp.ne.s32.totalorder %s53, %s54
      %p66 = scmp.eq.s32.totalorder %s23, 1
      %p67 = por %p65, %p66
      %p69 = scmp.ne.s32.totalorder %s54, %s68
      %p70 = scmp.eq.s32.totalorder %s23, 0
      %p71 = por %p69, %p70
      %s73 = sadd.s32 %s72, 1
      %p76 = scmp.eq.s32.totalorder %s17, 1
      %p77 = scmp.ne.s32.totalorder %s72, %s74
      %p78 = scmp.eq.s32.totalorder %s17, 0
      %p79 = por %p77, %p78
      %p80 = scmp.ne.s32.totalorder %s72, %s74
      %p81 = scmp.eq.s32.totalorder %s22, 1
      %p82 = por %p80, %p81
      %p83 = scmp.ne.s32.totalorder %s74, %s75
      %p84 = scmp.eq.s32.totalorder %s22, 0
      %p85 = por %p83, %p84
      %p86 = scmp.ne.s32.totalorder %s74, %s75
      %p87 = scmp.eq.s32.totalorder %s23, 1
      %p88 = por %p86, %p87
      %p90 = scmp.ne.s32.totalorder %s75, %s89
      %p91 = scmp.eq.s32.totalorder %s23, 0
      %p92 = por %p90, %p91
      %s94 = sadd.s32 %s93, 1
      %p97 = scmp.eq.s32.totalorder %s17, 1
      %p98 = scmp.ne.s32.totalorder %s93, %s95
      %p99 = scmp.eq.s32.totalorder %s17, 0
      %p100 = por %p98, %p99
      %p101 = scmp.ne.s32.totalorder %s93, %s95
      %p102 = scmp.eq.s32.totalorder %s22, 1
      %p103 = por %p101, %p102
      %p104 = scmp.ne.s32.totalorder %s95, %s96
      %p105 = scmp.eq.s32.totalorder %s22, 0
      %p106 = por %p104, %p105
      %p107 = scmp.ne.s32.totalorder %s95, %s96
      %p108 = scmp.eq.s32.totalorder %s23, 1
      %p109 = por %p107, %p108
      %p111 = scmp.ne.s32.totalorder %s96, %s110
      %p112 = scmp.eq.s32.totalorder %s23, 0
      %p113 = por %p111, %p112
      %s114 = ssub.s32 %s17, %s24
      %p115 = scmp.eq.s32.totalorder %s114, 0
      %s117 = sadd.s32 %s116, 1
      %s118 = scalar_select %p115, %s116, %s117
      %p121 = pneg %p115
      %p122 = scmp.eq.s32.totalorder %s17, 1
      %p123 = por %p121, %p122
      %p124 = scmp.ne.s32.totalorder %s116, %s119
      %p125 = scmp.eq.s32.totalorder %s17, 0
      %p126 = por %p124, %p125
      %p127 = scmp.ne.s32.totalorder %s116, %s119
      %p128 = scmp.eq.s32.totalorder %s22, 1
      %p129 = por %p127, %p128
      %p130 = scmp.ne.s32.totalorder %s119, %s120
      %p131 = scmp.eq.s32.totalorder %s22, 0
      %p132 = por %p130, %p131
      %p133 = scmp.ne.s32.totalorder %s119, %s120
      %p134 = scmp.eq.s32.totalorder %s23, 1
      %p135 = por %p133, %p134
      %p137 = scmp.ne.s32.totalorder %s120, %s136
      %p138 = scmp.eq.s32.totalorder %s23, 0
      %p139 = por %p137, %p138
      %p140 = scmp.le.s32.totalorder 1, %s17
      %p141 = scmp.lt.s32.totalorder %s17, 3
      %p142 = pnand %p140, %p141
      %p143 = pneg %p142
      // Predicated region
      $region9: #{tpu_custom_call.1} parent=5 // pred_check
        _
      $region10: #{tpu_custom_call.1} parent=5 // pred_check_branch
        %145 = sbr.rel (%p142) target = $region12
      $region11: #{tpu_custom_call.1} parent=5 // pred_region
        %s146 = ssub.s32 %s17, 1
        // Predicated region
        $region13: #{tpu_custom_call.1} parent=11 // pred_check
          %p147 = pneg %p64
        $region14: #{tpu_custom_call.1} parent=11 // pred_check_branch
          %149 = sbr.rel (%p147) target = $region16
        $region15: #{tpu_custom_call.1} parent=11 // pred_region
          %s151 = ssub.s32 16384, 16384
          %152 = vsyncadd [#allocation6], %s151
          %s153 = sshll.u32 [#allocation5], 4
          %s154 = int_to_ptr.vmem [resolvable:$true] %s153
          %159 = dma.hbm_to_vmem [thread:$0]  %s1, 16384, %s154, [#allocation6], 256, 256, 16
        $region16: #{tpu_custom_call.1} parent=11 // pred_fallthru
          _
        // Predicated region
        $region17: #{tpu_custom_call.1} parent=11 // pred_check
          %p160 = pneg %p85
        $region18: #{tpu_custom_call.1} parent=11 // pred_check_branch
          %162 = sbr.rel (%p160) target = $region20
        $region19: #{tpu_custom_call.1} parent=11 // pred_region
          _
        $region20: #{tpu_custom_call.1} parent=11 // pred_fallthru
          _
        // Predicated region
        $region21: #{tpu_custom_call.1} parent=11 // pred_check
          %p163 = pneg %p106
        $region22: #{tpu_custom_call.1} parent=11 // pred_check_branch
          %165 = sbr.rel (%p163) target = $region24
        $region23: #{tpu_custom_call.1} parent=11 // pred_region
          %s167 = ssub.s32 4096, 4096
          %168 = vsyncadd [#allocation6], %s167
          %s169 = sshll.u32 [#allocation7], 4
          %s170 = int_to_ptr.vmem [resolvable:$true] %s169
          %175 = dma.hbm_to_vmem [thread:$0]  %s3, 4096, %s170, [#allocation6], 64, 64, 4
        $region24: #{tpu_custom_call.1} parent=11 // pred_fallthru
          _
      $region12: #{tpu_custom_call.1} parent=5 // pred_fallthru
        _
      %p176 = scmp.lt.s32.totalorder %s17, 2
      // Predicated region
      $region25: #{tpu_custom_call.1} parent=5 // pred_check
        %p177 = pneg %p176
      $region26: #{tpu_custom_call.1} parent=5 // pred_check_branch
        %179 = sbr.rel (%p177) target = $region28
      $region27: #{tpu_custom_call.1} parent=5 // pred_region
        // Predicated region
        $region29: #{tpu_custom_call.1} parent=27 // pred_check
          %p180 = pneg %p37
        $region30: #{tpu_custom_call.1} parent=27 // pred_check_branch
          %182 = sbr.rel (%p180) target = $region32
        $region31: #{tpu_custom_call.1} parent=27 // pred_region
          %s183 = sand.u32 %s27, 1
          %s184 = scalar_lea.sflag [#allocation3], %s183
          %s185 = sand.u32 %s27, 1
          %s186 = smul.addr %s185, 64
          %s187 = scalar_lea.vmem [#allocation2], %s186
          %s188 = smul.u32 4, %s17
          %s190 = ssub.s32 1024, 1024
          %191 = vsyncadd %s184, %s190
          %s192 = smul.addr %s188, 4
          %s193 = smul.addr %s192, 64
          %s194 = scalar_lea.hbm %s0, %s193
          %s195 = sshll.u32 %s187, 4
          %s196 = int_to_ptr.vmem [resolvable:$true] %s195
          %201 = dma.hbm_to_vmem [thread:$0]  %s194, 1024, %s196, %s184, 256, 256, 16
        $region32: #{tpu_custom_call.1} parent=27 // pred_fallthru
          _
      $region28: #{tpu_custom_call.1} parent=5 // pred_fallthru
        _
      %p202 = scmp.le.s32.totalorder 1, %s17
      %p203 = scmp.lt.s32.totalorder %s17, 3
      %p204 = pnand %p202, %p203
      %p205 = pneg %p204
      // Predicated region
      $region33: #{tpu_custom_call.1} parent=5 // pred_check
        _
      $region34: #{tpu_custom_call.1} parent=5 // pred_check_branch
        %207 = sbr.rel (%p204) target = $region36
      $region35: #{tpu_custom_call.1} parent=5 // pred_region
        %s208 = ssub.s32 %s17, 1
        %s209 = sand.u32 %s30, 1
        %s210 = scalar_lea.sflag [#allocation3], %s209
        %s211 = sand.u32 %s30, 1
        %s212 = smul.addr %s211, 64
        %s213 = scalar_lea.vmem [#allocation2], %s212
        // Predicated region
        $region37: #{tpu_custom_call.1} parent=35 // pred_check
          %p214 = pneg %p43
        $region38: #{tpu_custom_call.1} parent=35 // pred_check_branch
          %216 = sbr.rel (%p214) target = $region40
        $region39: #{tpu_custom_call.1} parent=35 // pred_region
          %217 = dma.done %s210, 1024
        $region40: #{tpu_custom_call.1} parent=35 // pred_fallthru
          _
        // Predicated region
        $region41: #{tpu_custom_call.1} parent=35 // pred_check
          %p218 = pneg %p64
        $region42: #{tpu_custom_call.1} parent=35 // pred_check_branch
          %220 = sbr.rel (%p218) target = $region44
        $region43: #{tpu_custom_call.1} parent=35 // pred_region
          %221 = dma.done [#allocation6], 16384
        $region44: #{tpu_custom_call.1} parent=35 // pred_fallthru
          _
        // Predicated region
        $region45: #{tpu_custom_call.1} parent=35 // pred_check
          %p222 = pneg %p106
        $region46: #{tpu_custom_call.1} parent=35 // pred_check_branch
          %224 = sbr.rel (%p222) target = $region48
        $region47: #{tpu_custom_call.1} parent=35 // pred_region
          %225 = dma.done [#allocation6], 4096
        $region48: #{tpu_custom_call.1} parent=35 // pred_fallthru
          _
        %s226 = sand.u32 %s30, 1
        %s227 = scalar_lea.sflag [#allocation3], %s226
        %s228 = sand.u32 %s30, 1
        %s229 = smul.addr %s228, 64
        %s230 = scalar_lea.vmem [#allocation2], %s229
        %p231 = pneg %p43
        %p232 = pneg %p40
        %p233 = pneg %p64
        %p234 = pneg %p61
        %p235 = pneg %p85
        %p236 = pneg %p82
        %p237 = pneg %p106
        %p238 = pneg %p103
        %p239 = pneg %p132
        %p240 = pneg %p129
        %s241 = sand.u32 %s119, 1
        %s242 = scalar_lea.sflag [#allocation4], %s241
        %s243 = sand.u32 %s119, 1
        %s244 = smul.addr %s243, 32
        %s245 = scalar_lea.vmem [#allocation8], %s244
        %s246 = smul.u32 4, %s22
        %s247 = smul.u32 4, %s22
        %v249 = vld [vmem:[%s213] sm:$0xff]
        %v250 = vld [vmem:[%s213 + $0x8] sm:$0xff]
        %v251 = vld [vmem:[%s213 + $0x10] sm:$0xff]
        %v252 = vld [vmem:[%s213 + $0x18] sm:$0xff]
        %v253 = vld [vmem:[%s213 + $0x20] sm:$0xff]
        %v254 = vld [vmem:[%s213 + $0x28] sm:$0xff]
        %v255 = vld [vmem:[%s213 + $0x30] sm:$0xff]
        %v256 = vld [vmem:[%s213 + $0x38] sm:$0xff]
        %v257 = vld [vmem:[#allocation5] sm:$0xff]
        %v258 = vld [vmem:[#allocation5 + $0x8] sm:$0xff]
        %v259 = vld [vmem:[#allocation5 + $0x10] sm:$0xff]
        %v260 = vld [vmem:[#allocation5 + $0x18] sm:$0xff]
        %v261 = vld [vmem:[#allocation5 + $0x20] sm:$0xff]
        %v262 = vld [vmem:[#allocation5 + $0x28] sm:$0xff]
        %v263 = vld [vmem:[#allocation5 + $0x30] sm:$0xff]
        %v264 = vld [vmem:[#allocation5 + $0x38] sm:$0xff]
        %v265 = vld [vmem:[#allocation5 + $0x40] sm:$0xff]
        %v266 = vld [vmem:[#allocation5 + $0x48] sm:$0xff]
        %v267 = vld [vmem:[#allocation5 + $0x50] sm:$0xff]
        %v268 = vld [vmem:[#allocation5 + $0x58] sm:$0xff]
        %v269 = vld [vmem:[#allocation5 + $0x60] sm:$0xff]
        %v270 = vld [vmem:[#allocation5 + $0x68] sm:$0xff]
        %v271 = vld [vmem:[#allocation5 + $0x70] sm:$0xff]
        %v272 = vld [vmem:[#allocation5 + $0x78] sm:$0xff]
        %v273 = vld [vmem:[#allocation5 + $0x80] sm:$0xff]
        %v274 = vld [vmem:[#allocation5 + $0x88] sm:$0xff]
        %v275 = vld [vmem:[#allocation5 + $0x90] sm:$0xff]
        %v276 = vld [vmem:[#allocation5 + $0x98] sm:$0xff]
        %v277 = vld [vmem:[#allocation5 + $0xa0] sm:$0xff]
        %v278 = vld [vmem:[#allocation5 + $0xa8] sm:$0xff]
        %v279 = vld [vmem:[#allocation5 + $0xb0] sm:$0xff]
        %v280 = vld [vmem:[#allocation5 + $0xb8] sm:$0xff]
        %v281 = vld [vmem:[#allocation5 + $0xc0] sm:$0xff]
        %v282 = vld [vmem:[#allocation5 + $0xc8] sm:$0xff]
        %v283 = vld [vmem:[#allocation5 + $0xd0] sm:$0xff]
        %v284 = vld [vmem:[#allocation5 + $0xd8] sm:$0xff]
        %v285 = vld [vmem:[#allocation5 + $0xe0] sm:$0xff]
        %v286 = vld [vmem:[#allocation5 + $0xe8] sm:$0xff]
        %v287 = vld [vmem:[#allocation5 + $0xf0] sm:$0xff]
        %v288 = vld [vmem:[#allocation5 + $0xf8] sm:$0xff]
        %v289 = vld [vmem:[#allocation5 + $0x100] sm:$0xff]
        %v290 = vld [vmem:[#allocation5 + $0x108] sm:$0xff]
        %v291 = vld [vmem:[#allocation5 + $0x110] sm:$0xff]
        %v292 = vld [vmem:[#allocation5 + $0x118] sm:$0xff]
        %v293 = vld [vmem:[#allocation5 + $0x120] sm:$0xff]
        %v294 = vld [vmem:[#allocation5 + $0x128] sm:$0xff]
        %v295 = vld [vmem:[#allocation5 + $0x130] sm:$0xff]
        %v296 = vld [vmem:[#allocation5 + $0x138] sm:$0xff]
        %v297 = vld [vmem:[#allocation5 + $0x140] sm:$0xff]
        %v298 = vld [vmem:[#allocation5 + $0x148] sm:$0xff]
        %v299 = vld [vmem:[#allocation5 + $0x150] sm:$0xff]
        %v300 = vld [vmem:[#allocation5 + $0x158] sm:$0xff]
        %v301 = vld [vmem:[#allocation5 + $0x160] sm:$0xff]
        %v302 = vld [vmem:[#allocation5 + $0x168] sm:$0xff]
        %v303 = vld [vmem:[#allocation5 + $0x170] sm:$0xff]
        %v304 = vld [vmem:[#allocation5 + $0x178] sm:$0xff]
        %v305 = vld [vmem:[#allocation5 + $0x180] sm:$0xff]
        %v306 = vld [vmem:[#allocation5 + $0x188] sm:$0xff]
        %v307 = vld [vmem:[#allocation5 + $0x190] sm:$0xff]
        %v308 = vld [vmem:[#allocation5 + $0x198] sm:$0xff]
        %v309 = vld [vmem:[#allocation5 + $0x1a0] sm:$0xff]
        %v310 = vld [vmem:[#allocation5 + $0x1a8] sm:$0xff]
        %v311 = vld [vmem:[#allocation5 + $0x1b0] sm:$0xff]
        %v312 = vld [vmem:[#allocation5 + $0x1b8] sm:$0xff]
        %v313 = vld [vmem:[#allocation5 + $0x1c0] sm:$0xff]
        %v314 = vld [vmem:[#allocation5 + $0x1c8] sm:$0xff]
        %v315 = vld [vmem:[#allocation5 + $0x1d0] sm:$0xff]
        %v316 = vld [vmem:[#allocation5 + $0x1d8] sm:$0xff]
        %v317 = vld [vmem:[#allocation5 + $0x1e0] sm:$0xff]
        %v318 = vld [vmem:[#allocation5 + $0x1e8] sm:$0xff]
        %v319 = vld [vmem:[#allocation5 + $0x1f0] sm:$0xff]
        %v320 = vld [vmem:[#allocation5 + $0x1f8] sm:$0xff]
        %v321 = vld [vmem:[#allocation5 + $0x200] sm:$0xff]
        %v322 = vld [vmem:[#allocation5 + $0x208] sm:$0xff]
        %v323 = vld [vmem:[#allocation5 + $0x210] sm:$0xff]
        %v324 = vld [vmem:[#allocation5 + $0x218] sm:$0xff]
        %v325 = vld [vmem:[#allocation5 + $0x220] sm:$0xff]
        %v326 = vld [vmem:[#allocation5 + $0x228] sm:$0xff]
        %v327 = vld [vmem:[#allocation5 + $0x230] sm:$0xff]
        %v328 = vld [vmem:[#allocation5 + $0x238] sm:$0xff]
        %v329 = vld [vmem:[#allocation5 + $0x240] sm:$0xff]
        %v330 = vld [vmem:[#allocation5 + $0x248] sm:$0xff]
        %v331 = vld [vmem:[#allocation5 + $0x250] sm:$0xff]
        %v332 = vld [vmem:[#allocation5 + $0x258] sm:$0xff]
        %v333 = vld [vmem:[#allocation5 + $0x260] sm:$0xff]
        %v334 = vld [vmem:[#allocation5 + $0x268] sm:$0xff]
        %v335 = vld [vmem:[#allocation5 + $0x270] sm:$0xff]
        %v336 = vld [vmem:[#allocation5 + $0x278] sm:$0xff]
        %v337 = vld [vmem:[#allocation5 + $0x280] sm:$0xff]
        %v338 = vld [vmem:[#allocation5 + $0x288] sm:$0xff]
        %v339 = vld [vmem:[#allocation5 + $0x290] sm:$0xff]
        %v340 = vld [vmem:[#allocation5 + $0x298] sm:$0xff]
        %v341 = vld [vmem:[#allocation5 + $0x2a0] sm:$0xff]
        %v342 = vld [vmem:[#allocation5 + $0x2a8] sm:$0xff]
        %v343 = vld [vmem:[#allocation5 + $0x2b0] sm:$0xff]
        %v344 = vld [vmem:[#allocation5 + $0x2b8] sm:$0xff]
        %v345 = vld [vmem:[#allocation5 + $0x2c0] sm:$0xff]
        %v346 = vld [vmem:[#allocation5 + $0x2c8] sm:$0xff]
        %v347 = vld [vmem:[#allocation5 + $0x2d0] sm:$0xff]
        %v348 = vld [vmem:[#allocation5 + $0x2d8] sm:$0xff]
        %v349 = vld [vmem:[#allocation5 + $0x2e0] sm:$0xff]
        %v350 = vld [vmem:[#allocation5 + $0x2e8] sm:$0xff]
        %v351 = vld [vmem:[#allocation5 + $0x2f0] sm:$0xff]
        %v352 = vld [vmem:[#allocation5 + $0x2f8] sm:$0xff]
        %v353 = vld [vmem:[#allocation5 + $0x300] sm:$0xff]
        %v354 = vld [vmem:[#allocation5 + $0x308] sm:$0xff]
        %v355 = vld [vmem:[#allocation5 + $0x310] sm:$0xff]
        %v356 = vld [vmem:[#allocation5 + $0x318] sm:$0xff]
        %v357 = vld [vmem:[#allocation5 + $0x320] sm:$0xff]
        %v358 = vld [vmem:[#allocation5 + $0x328] sm:$0xff]
        %v359 = vld [vmem:[#allocation5 + $0x330] sm:$0xff]
        %v360 = vld [vmem:[#allocation5 + $0x338] sm:$0xff]
        %v361 = vld [vmem:[#allocation5 + $0x340] sm:$0xff]
        %v362 = vld [vmem:[#allocation5 + $0x348] sm:$0xff]
        %v363 = vld [vmem:[#allocation5 + $0x350] sm:$0xff]
        %v364 = vld [vmem:[#allocation5 + $0x358] sm:$0xff]
        %v365 = vld [vmem:[#allocation5 + $0x360] sm:$0xff]
        %v366 = vld [vmem:[#allocation5 + $0x368] sm:$0xff]
        %v367 = vld [vmem:[#allocation5 + $0x370] sm:$0xff]
        %v368 = vld [vmem:[#allocation5 + $0x378] sm:$0xff]
        %v369 = vld [vmem:[#allocation5 + $0x380] sm:$0xff]
        %v370 = vld [vmem:[#allocation5 + $0x388] sm:$0xff]
        %v371 = vld [vmem:[#allocation5 + $0x390] sm:$0xff]
        %v372 = vld [vmem:[#allocation5 + $0x398] sm:$0xff]
        %v373 = vld [vmem:[#allocation5 + $0x3a0] sm:$0xff]
        %v374 = vld [vmem:[#allocation5 + $0x3a8] sm:$0xff]
        %v375 = vld [vmem:[#allocation5 + $0x3b0] sm:$0xff]
        %v376 = vld [vmem:[#allocation5 + $0x3b8] sm:$0xff]
        %v377 = vld [vmem:[#allocation5 + $0x3c0] sm:$0xff]
        %v378 = vld [vmem:[#allocation5 + $0x3c8] sm:$0xff]
        %v379 = vld [vmem:[#allocation5 + $0x3d0] sm:$0xff]
        %v380 = vld [vmem:[#allocation5 + $0x3d8] sm:$0xff]
        %v381 = vld [vmem:[#allocation5 + $0x3e0] sm:$0xff]
        %v382 = vld [vmem:[#allocation5 + $0x3e8] sm:$0xff]
        %v383 = vld [vmem:[#allocation5 + $0x3f0] sm:$0xff]
        %v384 = vld [vmem:[#allocation5 + $0x3f8] sm:$0xff]
        %v385 = vld [vmem:[%s2] sm:$0xf]
        %v387 = vlaneseq
        %v388 = vshrl.u32 %v387, 7
        %v389 = vsub.s32 0, %v388
        %v390 = vrot.slane %v385, %v389
        %v391 = vlaneseq
        %v392 = vshrl.u32 %v391, 7
        %v393 = vsub.s32 1, %v392
        %v394 = vrot.slane %v385, %v393
        %v395 = vlaneseq
        %v396 = vshrl.u32 %v395, 7
        %v397 = vsub.s32 2, %v396
        %v398 = vrot.slane %v385, %v397
        %v399 = vlaneseq
        %v400 = vshrl.u32 %v399, 7
        %v401 = vsub.s32 3, %v400
        %v402 = vrot.slane %v385, %v401
        %v415 = vunpack.c.l.b16 %v249
        %v416 = vunpack.c.h.b16 %v249
        %v417 = vunpack.c.l.b16 %v250
        %v418 = vunpack.c.h.b16 %v250
        %v419 = vunpack.c.l.b16 %v251
        %v420 = vunpack.c.h.b16 %v251
        %v421 = vunpack.c.l.b16 %v252
        %v422 = vunpack.c.h.b16 %v252
        %v423 = vunpack.c.l.b16 %v253
        %v424 = vunpack.c.h.b16 %v253
        %v425 = vunpack.c.l.b16 %v254
        %v426 = vunpack.c.h.b16 %v254
        %v427 = vunpack.c.l.b16 %v255
        %v428 = vunpack.c.h.b16 %v255
        %v429 = vunpack.c.l.b16 %v256
        %v430 = vunpack.c.h.b16 %v256
        %v431 = vpack.c.b16 %v419, %v415
        %v432 = vpack.c.b16 %v420, %v416
        %v433 = vpack.c.b16 %v421, %v417
        %v434 = vpack.c.b16 %v422, %v418
        %v435 = vpack.c.b16 %v427, %v423
        %v436 = vpack.c.b16 %v428, %v424
        %v437 = vpack.c.b16 %v429, %v425
        %v438 = vpack.c.b16 %v430, %v426
        %v575 = vunpack.c.l.b16 %v257
        %v576 = vunpack.c.h.b16 %v257
        %v577 = vunpack.c.l.b16 %v258
        %v578 = vunpack.c.h.b16 %v258
        %v579 = vunpack.c.l.b16 %v259
        %v580 = vunpack.c.h.b16 %v259
        %v581 = vunpack.c.l.b16 %v260
        %v582 = vunpack.c.h.b16 %v260
        %v583 = vunpack.c.l.b16 %v261
        %v584 = vunpack.c.h.b16 %v261
        %v585 = vunpack.c.l.b16 %v262
        %v586 = vunpack.c.h.b16 %v262
        %v587 = vunpack.c.l.b16 %v263
        %v588 = vunpack.c.h.b16 %v263
        %v589 = vunpack.c.l.b16 %v264
        %v590 = vunpack.c.h.b16 %v264
        %v591 = vunpack.c.l.b16 %v265
        %v592 = vunpack.c.h.b16 %v265
        %v593 = vunpack.c.l.b16 %v266
        %v594 = vunpack.c.h.b16 %v266
        %v595 = vunpack.c.l.b16 %v267
        %v596 = vunpack.c.h.b16 %v267
        %v597 = vunpack.c.l.b16 %v268
        %v598 = vunpack.c.h.b16 %v268
        %v599 = vunpack.c.l.b16 %v269
        %v600 = vunpack.c.h.b16 %v269
        %v601 = vunpack.c.l.b16 %v270
        %v602 = vunpack.c.h.b16 %v270
        %v603 = vunpack.c.l.b16 %v271
        %v604 = vunpack.c.h.b16 %v271
        %v605 = vunpack.c.l.b16 %v272
        %v606 = vunpack.c.h.b16 %v272
        %v607 = vunpack.c.l.b16 %v273
        %v608 = vunpack.c.h.b16 %v273
        %v609 = vunpack.c.l.b16 %v274
        %v610 = vunpack.c.h.b16 %v274
        %v611 = vunpack.c.l.b16 %v275
        %v612 = vunpack.c.h.b16 %v275
        %v613 = vunpack.c.l.b16 %v276
        %v614 = vunpack.c.h.b16 %v276
        %v615 = vunpack.c.l.b16 %v277
        %v616 = vunpack.c.h.b16 %v277
        %v617 = vunpack.c.l.b16 %v278
        %v618 = vunpack.c.h.b16 %v278
        %v619 = vunpack.c.l.b16 %v279
        %v620 = vunpack.c.h.b16 %v279
        %v621 = vunpack.c.l.b16 %v280
        %v622 = vunpack.c.h.b16 %v280
        %v623 = vunpack.c.l.b16 %v281
        %v624 = vunpack.c.h.b16 %v281
        %v625 = vunpack.c.l.b16 %v282
        %v626 = vunpack.c.h.b16 %v282
        %v627 = vunpack.c.l.b16 %v283
        %v628 = vunpack.c.h.b16 %v283
        %v629 = vunpack.c.l.b16 %v284
        %v630 = vunpack.c.h.b16 %v284
        %v631 = vunpack.c.l.b16 %v285
        %v632 = vunpack.c.h.b16 %v285
        %v633 = vunpack.c.l.b16 %v286
        %v634 = vunpack.c.h.b16 %v286
        %v635 = vunpack.c.l.b16 %v287
        %v636 = vunpack.c.h.b16 %v287
        %v637 = vunpack.c.l.b16 %v288
        %v638 = vunpack.c.h.b16 %v288
        %v639 = vunpack.c.l.b16 %v289
        %v640 = vunpack.c.h.b16 %v289
        %v641 = vunpack.c.l.b16 %v290
        %v642 = vunpack.c.h.b16 %v290
        %v643 = vunpack.c.l.b16 %v291
        %v644 = vunpack.c.h.b16 %v291
        %v645 = vunpack.c.l.b16 %v292
        %v646 = vunpack.c.h.b16 %v292
        %v647 = vunpack.c.l.b16 %v293
        %v648 = vunpack.c.h.b16 %v293
        %v649 = vunpack.c.l.b16 %v294
        %v650 = vunpack.c.h.b16 %v294
        %v651 = vunpack.c.l.b16 %v295
        %v652 = vunpack.c.h.b16 %v295
        %v653 = vunpack.c.l.b16 %v296
        %v654 = vunpack.c.h.b16 %v296
        %v655 = vunpack.c.l.b16 %v297
        %v656 = vunpack.c.h.b16 %v297
        %v657 = vunpack.c.l.b16 %v298
        %v658 = vunpack.c.h.b16 %v298
        %v659 = vunpack.c.l.b16 %v299
        %v660 = vunpack.c.h.b16 %v299
        %v661 = vunpack.c.l.b16 %v300
        %v662 = vunpack.c.h.b16 %v300
        %v663 = vunpack.c.l.b16 %v301
        %v664 = vunpack.c.h.b16 %v301
        %v665 = vunpack.c.l.b16 %v302
        %v666 = vunpack.c.h.b16 %v302
        %v667 = vunpack.c.l.b16 %v303
        %v668 = vunpack.c.h.b16 %v303
        %v669 = vunpack.c.l.b16 %v304
        %v670 = vunpack.c.h.b16 %v304
        %v671 = vunpack.c.l.b16 %v305
        %v672 = vunpack.c.h.b16 %v305
        %v673 = vunpack.c.l.b16 %v306
        %v674 = vunpack.c.h.b16 %v306
        %v675 = vunpack.c.l.b16 %v307
        %v676 = vunpack.c.h.b16 %v307
        %v677 = vunpack.c.l.b16 %v308
        %v678 = vunpack.c.h.b16 %v308
        %v679 = vunpack.c.l.b16 %v309
        %v680 = vunpack.c.h.b16 %v309
        %v681 = vunpack.c.l.b16 %v310
        %v682 = vunpack.c.h.b16 %v310
        %v683 = vunpack.c.l.b16 %v311
        %v684 = vunpack.c.h.b16 %v311
        %v685 = vunpack.c.l.b16 %v312
        %v686 = vunpack.c.h.b16 %v312
        %v687 = vunpack.c.l.b16 %v313
        %v688 = vunpack.c.h.b16 %v313
        %v689 = vunpack.c.l.b16 %v314
        %v690 = vunpack.c.h.b16 %v314
        %v691 = vunpack.c.l.b16 %v315
        %v692 = vunpack.c.h.b16 %v315
        %v693 = vunpack.c.l.b16 %v316
        %v694 = vunpack.c.h.b16 %v316
        %v695 = vunpack.c.l.b16 %v317
        %v696 = vunpack.c.h.b16 %v317
        %v697 = vunpack.c.l.b16 %v318
        %v698 = vunpack.c.h.b16 %v318
        %v699 = vunpack.c.l.b16 %v319
        %v700 = vunpack.c.h.b16 %v319
        %v701 = vunpack.c.l.b16 %v320
        %v702 = vunpack.c.h.b16 %v320
        %v703 = vunpack.c.l.b16 %v321
        %v704 = vunpack.c.h.b16 %v321
        %v705 = vunpack.c.l.b16 %v322
        %v706 = vunpack.c.h.b16 %v322
        %v707 = vunpack.c.l.b16 %v323
        %v708 = vunpack.c.h.b16 %v323
        %v709 = vunpack.c.l.b16 %v324
        %v710 = vunpack.c.h.b16 %v324
        %v711 = vunpack.c.l.b16 %v325
        %v712 = vunpack.c.h.b16 %v325
        %v713 = vunpack.c.l.b16 %v326
        %v714 = vunpack.c.h.b16 %v326
        %v715 = vunpack.c.l.b16 %v327
        %v716 = vunpack.c.h.b16 %v327
        %v717 = vunpack.c.l.b16 %v328
        %v718 = vunpack.c.h.b16 %v328
        %v719 = vunpack.c.l.b16 %v329
        %v720 = vunpack.c.h.b16 %v329
        %v721 = vunpack.c.l.b16 %v330
        %v722 = vunpack.c.h.b16 %v330
        %v723 = vunpack.c.l.b16 %v331
        %v724 = vunpack.c.h.b16 %v331
        %v725 = vunpack.c.l.b16 %v332
        %v726 = vunpack.c.h.b16 %v332
        %v727 = vunpack.c.l.b16 %v333
        %v728 = vunpack.c.h.b16 %v333
        %v729 = vunpack.c.l.b16 %v334
        %v730 = vunpack.c.h.b16 %v334
        %v731 = vunpack.c.l.b16 %v335
        %v732 = vunpack.c.h.b16 %v335
        %v733 = vunpack.c.l.b16 %v336
        %v734 = vunpack.c.h.b16 %v336
        %v735 = vunpack.c.l.b16 %v337
        %v736 = vunpack.c.h.b16 %v337
        %v737 = vunpack.c.l.b16 %v338
        %v738 = vunpack.c.h.b16 %v338
        %v739 = vunpack.c.l.b16 %v339
        %v740 = vunpack.c.h.b16 %v339
        %v741 = vunpack.c.l.b16 %v340
        %v742 = vunpack.c.h.b16 %v340
        %v743 = vunpack.c.l.b16 %v341
        %v744 = vunpack.c.h.b16 %v341
        %v745 = vunpack.c.l.b16 %v342
        %v746 = vunpack.c.h.b16 %v342
        %v747 = vunpack.c.l.b16 %v343
        %v748 = vunpack.c.h.b16 %v343
        %v749 = vunpack.c.l.b16 %v344
        %v750 = vunpack.c.h.b16 %v344
        %v751 = vunpack.c.l.b16 %v345
        %v752 = vunpack.c.h.b16 %v345
        %v753 = vunpack.c.l.b16 %v346
        %v754 = vunpack.c.h.b16 %v346
        %v755 = vunpack.c.l.b16 %v347
        %v756 = vunpack.c.h.b16 %v347
        %v757 = vunpack.c.l.b16 %v348
        %v758 = vunpack.c.h.b16 %v348
        %v759 = vunpack.c.l.b16 %v349
        %v760 = vunpack.c.h.b16 %v349
        %v761 = vunpack.c.l.b16 %v350
        %v762 = vunpack.c.h.b16 %v350
        %v763 = vunpack.c.l.b16 %v351
        %v764 = vunpack.c.h.b16 %v351
        %v765 = vunpack.c.l.b16 %v352
        %v766 = vunpack.c.h.b16 %v352
        %v767 = vunpack.c.l.b16 %v353
        %v768 = vunpack.c.h.b16 %v353
        %v769 = vunpack.c.l.b16 %v354
        %v770 = vunpack.c.h.b16 %v354
        %v771 = vunpack.c.l.b16 %v355
        %v772 = vunpack.c.h.b16 %v355
        %v773 = vunpack.c.l.b16 %v356
        %v774 = vunpack.c.h.b16 %v356
        %v775 = vunpack.c.l.b16 %v357
        %v776 = vunpack.c.h.b16 %v357
        %v777 = vunpack.c.l.b16 %v358
        %v778 = vunpack.c.h.b16 %v358
        %v779 = vunpack.c.l.b16 %v359
        %v780 = vunpack.c.h.b16 %v359
        %v781 = vunpack.c.l.b16 %v360
        %v782 = vunpack.c.h.b16 %v360
        %v783 = vunpack.c.l.b16 %v361
        %v784 = vunpack.c.h.b16 %v361
        %v785 = vunpack.c.l.b16 %v362
        %v786 = vunpack.c.h.b16 %v362
        %v787 = vunpack.c.l.b16 %v363
        %v788 = vunpack.c.h.b16 %v363
        %v789 = vunpack.c.l.b16 %v364
        %v790 = vunpack.c.h.b16 %v364
        %v791 = vunpack.c.l.b16 %v365
        %v792 = vunpack.c.h.b16 %v365
        %v793 = vunpack.c.l.b16 %v366
        %v794 = vunpack.c.h.b16 %v366
        %v795 = vunpack.c.l.b16 %v367
        %v796 = vunpack.c.h.b16 %v367
        %v797 = vunpack.c.l.b16 %v368
        %v798 = vunpack.c.h.b16 %v368
        %v799 = vunpack.c.l.b16 %v369
        %v800 = vunpack.c.h.b16 %v369
        %v801 = vunpack.c.l.b16 %v370
        %v802 = vunpack.c.h.b16 %v370
        %v803 = vunpack.c.l.b16 %v371
        %v804 = vunpack.c.h.b16 %v371
        %v805 = vunpack.c.l.b16 %v372
        %v806 = vunpack.c.h.b16 %v372
        %v807 = vunpack.c.l.b16 %v373
        %v808 = vunpack.c.h.b16 %v373
        %v809 = vunpack.c.l.b16 %v374
        %v810 = vunpack.c.h.b16 %v374
        %v811 = vunpack.c.l.b16 %v375
        %v812 = vunpack.c.h.b16 %v375
        %v813 = vunpack.c.l.b16 %v376
        %v814 = vunpack.c.h.b16 %v376
        %v815 = vunpack.c.l.b16 %v377
        %v816 = vunpack.c.h.b16 %v377
        %v817 = vunpack.c.l.b16 %v378
        %v818 = vunpack.c.h.b16 %v378
        %v819 = vunpack.c.l.b16 %v379
        %v820 = vunpack.c.h.b16 %v379
        %v821 = vunpack.c.l.b16 %v380
        %v822 = vunpack.c.h.b16 %v380
        %v823 = vunpack.c.l.b16 %v381
        %v824 = vunpack.c.h.b16 %v381
        %v825 = vunpack.c.l.b16 %v382
        %v826 = vunpack.c.h.b16 %v382
        %v827 = vunpack.c.l.b16 %v383
        %v828 = vunpack.c.h.b16 %v383
        %v829 = vunpack.c.l.b16 %v384
        %v830 = vunpack.c.h.b16 %v384
        %v831 = vpack.c.b16 %v579, %v575
        %v832 = vpack.c.b16 %v580, %v576
        %v833 = vpack.c.b16 %v581, %v577
        %v834 = vpack.c.b16 %v582, %v578
        %v835 = vpack.c.b16 %v587, %v583
        %v836 = vpack.c.b16 %v588, %v584
        %v837 = vpack.c.b16 %v589, %v585
        %v838 = vpack.c.b16 %v590, %v586
        %v839 = vpack.c.b16 %v595, %v591
        %v840 = vpack.c.b16 %v596, %v592
        %v841 = vpack.c.b16 %v597, %v593
        %v842 = vpack.c.b16 %v598, %v594
        %v843 = vpack.c.b16 %v603, %v599
        %v844 = vpack.c.b16 %v604, %v600
        %v845 = vpack.c.b16 %v605, %v601
        %v846 = vpack.c.b16 %v606, %v602
        %v847 = vpack.c.b16 %v611, %v607
        %v848 = vpack.c.b16 %v612, %v608
        %v849 = vpack.c.b16 %v613, %v609
        %v850 = vpack.c.b16 %v614, %v610
        %v851 = vpack.c.b16 %v619, %v615
        %v852 = vpack.c.b16 %v620, %v616
        %v853 = vpack.c.b16 %v621, %v617
        %v854 = vpack.c.b16 %v622, %v618
        %v855 = vpack.c.b16 %v627, %v623
        %v856 = vpack.c.b16 %v628, %v624
        %v857 = vpack.c.b16 %v629, %v625
        %v858 = vpack.c.b16 %v630, %v626
        %v859 = vpack.c.b16 %v635, %v631
        %v860 = vpack.c.b16 %v636, %v632
        %v861 = vpack.c.b16 %v637, %v633
        %v862 = vpack.c.b16 %v638, %v634
        %v863 = vpack.c.b16 %v643, %v639
        %v864 = vpack.c.b16 %v644, %v640
        %v865 = vpack.c.b16 %v645, %v641
        %v866 = vpack.c.b16 %v646, %v642
        %v867 = vpack.c.b16 %v651, %v647
        %v868 = vpack.c.b16 %v652, %v648
        %v869 = vpack.c.b16 %v653, %v649
        %v870 = vpack.c.b16 %v654, %v650
        %v871 = vpack.c.b16 %v659, %v655
        %v872 = vpack.c.b16 %v660, %v656
        %v873 = vpack.c.b16 %v661, %v657
        %v874 = vpack.c.b16 %v662, %v658
        %v875 = vpack.c.b16 %v667, %v663
        %v876 = vpack.c.b16 %v668, %v664
        %v877 = vpack.c.b16 %v669, %v665
        %v878 = vpack.c.b16 %v670, %v666
        %v879 = vpack.c.b16 %v675, %v671
        %v880 = vpack.c.b16 %v676, %v672
        %v881 = vpack.c.b16 %v677, %v673
        %v882 = vpack.c.b16 %v678, %v674
        %v883 = vpack.c.b16 %v683, %v679
        %v884 = vpack.c.b16 %v684, %v680
        %v885 = vpack.c.b16 %v685, %v681
        %v886 = vpack.c.b16 %v686, %v682
        %v887 = vpack.c.b16 %v691, %v687
        %v888 = vpack.c.b16 %v692, %v688
        %v889 = vpack.c.b16 %v693, %v689
        %v890 = vpack.c.b16 %v694, %v690
        %v891 = vpack.c.b16 %v699, %v695
        %v892 = vpack.c.b16 %v700, %v696
        %v893 = vpack.c.b16 %v701, %v697
        %v894 = vpack.c.b16 %v702, %v698
        %v895 = vpack.c.b16 %v707, %v703
        %v896 = vpack.c.b16 %v708, %v704
        %v897 = vpack.c.b16 %v709, %v705
        %v898 = vpack.c.b16 %v710, %v706
        %v899 = vpack.c.b16 %v715, %v711
        %v900 = vpack.c.b16 %v716, %v712
        %v901 = vpack.c.b16 %v717, %v713
        %v902 = vpack.c.b16 %v718, %v714
        %v903 = vpack.c.b16 %v723, %v719
        %v904 = vpack.c.b16 %v724, %v720
        %v905 = vpack.c.b16 %v725, %v721
        %v906 = vpack.c.b16 %v726, %v722
        %v907 = vpack.c.b16 %v731, %v727
        %v908 = vpack.c.b16 %v732, %v728
        %v909 = vpack.c.b16 %v733, %v729
        %v910 = vpack.c.b16 %v734, %v730
        %v911 = vpack.c.b16 %v739, %v735
        %v912 = vpack.c.b16 %v740, %v736
        %v913 = vpack.c.b16 %v741, %v737
        %v914 = vpack.c.b16 %v742, %v738
        %v915 = vpack.c.b16 %v747, %v743
        %v916 = vpack.c.b16 %v748, %v744
        %v917 = vpack.c.b16 %v749, %v745
        %v918 = vpack.c.b16 %v750, %v746
        %v919 = vpack.c.b16 %v755, %v751
        %v920 = vpack.c.b16 %v756, %v752
        %v921 = vpack.c.b16 %v757, %v753
        %v922 = vpack.c.b16 %v758, %v754
        %v923 = vpack.c.b16 %v763, %v759
        %v924 = vpack.c.b16 %v764, %v760
        %v925 = vpack.c.b16 %v765, %v761
        %v926 = vpack.c.b16 %v766, %v762
        %v927 = vpack.c.b16 %v771, %v767
        %v928 = vpack.c.b16 %v772, %v768
        %v929 = vpack.c.b16 %v773, %v769
        %v930 = vpack.c.b16 %v774, %v770
        %v931 = vpack.c.b16 %v779, %v775
        %v932 = vpack.c.b16 %v780, %v776
        %v933 = vpack.c.b16 %v781, %v777
        %v934 = vpack.c.b16 %v782, %v778
        %v935 = vpack.c.b16 %v787, %v783
        %v936 = vpack.c.b16 %v788, %v784
        %v937 = vpack.c.b16 %v789, %v785
        %v938 = vpack.c.b16 %v790, %v786
        %v939 = vpack.c.b16 %v795, %v791
        %v940 = vpack.c.b16 %v796, %v792
        %v941 = vpack.c.b16 %v797, %v793
        %v942 = vpack.c.b16 %v798, %v794
        %v943 = vpack.c.b16 %v803, %v799
        %v944 = vpack.c.b16 %v804, %v800
        %v945 = vpack.c.b16 %v805, %v801
        %v946 = vpack.c.b16 %v806, %v802
        %v947 = vpack.c.b16 %v811, %v807
        %v948 = vpack.c.b16 %v812, %v808
        %v949 = vpack.c.b16 %v813, %v809
        %v950 = vpack.c.b16 %v814, %v810
        %v951 = vpack.c.b16 %v819, %v815
        %v952 = vpack.c.b16 %v820, %v816
        %v953 = vpack.c.b16 %v821, %v817
        %v954 = vpack.c.b16 %v822, %v818
        %v955 = vpack.c.b16 %v827, %v823
        %v956 = vpack.c.b16 %v828, %v824
        %v957 = vpack.c.b16 %v829, %v825
        %v958 = vpack.c.b16 %v830, %v826
        %1087 = vmatprep.subr.bf16.mxu0 %v832
        %1088 = vmatpush1.bf16.msra.mxu0 %v831
        %1089 = vmatprep.subr.bf16.mxu0 %v836
        %1090 = vmatpush1.bf16.msra.mxu0 %v835
        %1091 = vmatprep.subr.bf16.mxu0 %v840
        %1092 = vmatpush1.bf16.msra.mxu0 %v839
        %1093 = vmatprep.subr.bf16.mxu0 %v844
        %1094 = vmatpush1.bf16.msra.mxu0 %v843
        %1095 = vmatprep.subr.bf16.mxu0 %v848
        %1096 = vmatpush1.bf16.msra.mxu0 %v847
        %1097 = vmatprep.subr.bf16.mxu0 %v852
        %1098 = vmatpush1.bf16.msra.mxu0 %v851
        %1099 = vmatprep.subr.bf16.mxu0 %v856
        %1100 = vmatpush1.bf16.msra.mxu0 %v855
        %1101 = vmatprep.subr.bf16.mxu0 %v860
        %1102 = vmatpush1.bf16.msra.mxu0 %v859
        %1103 = vmatprep.subr.bf16.mxu0 %v864
        %1104 = vmatpush1.bf16.msra.mxu0 %v863
        %1105 = vmatprep.subr.bf16.mxu0 %v868
        %1106 = vmatpush1.bf16.msra.mxu0 %v867
        %1107 = vmatprep.subr.bf16.mxu0 %v872
        %1108 = vmatpush1.bf16.msra.mxu0 %v871
        %1109 = vmatprep.subr.bf16.mxu0 %v876
        %1110 = vmatpush1.bf16.msra.mxu0 %v875
        %1111 = vmatprep.subr.bf16.mxu0 %v880
        %1112 = vmatpush1.bf16.msra.mxu0 %v879
        %1113 = vmatprep.subr.bf16.mxu0 %v884
        %1114 = vmatpush1.bf16.msra.mxu0 %v883
        %1115 = vmatprep.subr.bf16.mxu0 %v888
        %1116 = vmatpush1.bf16.msra.mxu0 %v887
        %1117 = vmatprep.subr.bf16.mxu0 %v892
        %1118 = vmatpush1.bf16.msra.mxu0 %v891
        %1119 = vmatprep.mubr.bf16.mxu0 %v432
        %1120 = vmatmul.mubr.bf16.gmra.mrb[0].mxu0 %v431
        %v1121 = vpop.f32.mrb[0].mxu0
        %v1122 = vadd.f32 %v390, %v1121
        %v1123 = vpop.f32.mrb[0].mxu0
        %v1124 = vadd.f32 %v394, %v1123
        %v1125 = vpop.f32.mrb[0].mxu0
        %v1126 = vadd.f32 %v390, %v1125
        %v1127 = vpop.f32.mrb[0].mxu0
        %v1128 = vadd.f32 %v394, %v1127
        %1129 = vmatprep.mubr.bf16.mxu0 %v436
        %1130 = vmatmul.mubr.bf16.gmra.mrb[0].mxu0 %v435
        %v1131 = vpop.f32.mrb[0].mxu0
        %v1132 = vadd.f32 %v390, %v1131
        %v1133 = vpop.f32.mrb[0].mxu0
        %v1134 = vadd.f32 %v394, %v1133
        %v1135 = vpop.f32.mrb[0].mxu0
        %v1136 = vadd.f32 %v390, %v1135
        %v1137 = vpop.f32.mrb[0].mxu0
        %v1138 = vadd.f32 %v394, %v1137
        %1139 = vdwg.mxu0
        %1140 = vmatprep.subr.bf16.mxu0 %v896
        %1141 = vmatpush1.bf16.msra.mxu0 %v895
        %1142 = vmatprep.subr.bf16.mxu0 %v900
        %1143 = vmatpush1.bf16.msra.mxu0 %v899
        %1144 = vmatprep.subr.bf16.mxu0 %v904
        %1145 = vmatpush1.bf16.msra.mxu0 %v903
        %1146 = vmatprep.subr.bf16.mxu0 %v908
        %1147 = vmatpush1.bf16.msra.mxu0 %v907
        %1148 = vmatprep.subr.bf16.mxu0 %v912
        %1149 = vmatpush1.bf16.msra.mxu0 %v911
        %1150 = vmatprep.subr.bf16.mxu0 %v916
        %1151 = vmatpush1.bf16.msra.mxu0 %v915
        %1152 = vmatprep.subr.bf16.mxu0 %v920
        %1153 = vmatpush1.bf16.msra.mxu0 %v919
        %1154 = vmatprep.subr.bf16.mxu0 %v924
        %1155 = vmatpush1.bf16.msra.mxu0 %v923
        %1156 = vmatprep.subr.bf16.mxu0 %v928
        %1157 = vmatpush1.bf16.msra.mxu0 %v927
        %1158 = vmatprep.subr.bf16.mxu0 %v932
        %1159 = vmatpush1.bf16.msra.mxu0 %v931
        %1160 = vmatprep.subr.bf16.mxu0 %v936
        %1161 = vmatpush1.bf16.msra.mxu0 %v935
        %1162 = vmatprep.subr.bf16.mxu0 %v940
        %1163 = vmatpush1.bf16.msra.mxu0 %v939
        %1164 = vmatprep.subr.bf16.mxu0 %v944
        %1165 = vmatpush1.bf16.msra.mxu0 %v943
        %1166 = vmatprep.subr.bf16.mxu0 %v948
        %1167 = vmatpush1.bf16.msra.mxu0 %v947
        %1168 = vmatprep.subr.bf16.mxu0 %v952
        %1169 = vmatpush1.bf16.msra.mxu0 %v951
        %1170 = vmatprep.subr.bf16.mxu0 %v956
        %1171 = vmatpush1.bf16.msra.mxu0 %v955
        %1172 = vmatprep.mubr.bf16.mxu0 %v434
        %1173 = vmatmul.mubr.bf16.gmra.mrb[0].mxu0 %v433
        %v1174 = vpop.f32.mrb[0].mxu0
        %v1175 = vadd.f32 %v1122, %v1174
        %v1176 = vpop.f32.mrb[0].mxu0
        %v1177 = vadd.f32 %v1124, %v1176
        %v1178 = vpop.f32.mrb[0].mxu0
        %v1179 = vadd.f32 %v1126, %v1178
        %v1180 = vpop.f32.mrb[0].mxu0
        %v1181 = vadd.f32 %v1128, %v1180
        %1182 = vmatprep.mubr.bf16.mxu0 %v438
        %1183 = vmatmul.mubr.bf16.gmra.mrb[0].mxu0 %v437
        %v1184 = vpop.f32.mrb[0].mxu0
        %v1185 = vadd.f32 %v1132, %v1184
        %v1186 = vpop.f32.mrb[0].mxu0
        %v1187 = vadd.f32 %v1134, %v1186
        %v1188 = vpop.f32.mrb[0].mxu0
        %v1189 = vadd.f32 %v1136, %v1188
        %v1190 = vpop.f32.mrb[0].mxu0
        %v1191 = vadd.f32 %v1138, %v1190
        %1192 = vdwg.mxu0
        %1193 = vmatprep.subr.bf16.mxu0 %v834
        %1194 = vmatpush1.bf16.msra.mxu0 %v833
        %1195 = vmatprep.subr.bf16.mxu0 %v838
        %1196 = vmatpush1.bf16.msra.mxu0 %v837
        %1197 = vmatprep.subr.bf16.mxu0 %v842
        %1198 = vmatpush1.bf16.msra.mxu0 %v841
        %1199 = vmatprep.subr.bf16.mxu0 %v846
        %1200 = vmatpush1.bf16.msra.mxu0 %v845
        %1201 = vmatprep.subr.bf16.mxu0 %v850
        %1202 = vmatpush1.bf16.msra.mxu0 %v849
        %1203 = vmatprep.subr.bf16.mxu0 %v854
        %1204 = vmatpush1.bf16.msra.mxu0 %v853
        %1205 = vmatprep.subr.bf16.mxu0 %v858
        %1206 = vmatpush1.bf16.msra.mxu0 %v857
        %1207 = vmatprep.subr.bf16.mxu0 %v862
        %1208 = vmatpush1.bf16.msra.mxu0 %v861
        %1209 = vmatprep.subr.bf16.mxu0 %v866
        %1210 = vmatpush1.bf16.msra.mxu0 %v865
        %1211 = vmatprep.subr.bf16.mxu0 %v870
        %1212 = vmatpush1.bf16.msra.mxu0 %v869
        %1213 = vmatprep.subr.bf16.mxu0 %v874
        %1214 = vmatpush1.bf16.msra.mxu0 %v873
        %1215 = vmatprep.subr.bf16.mxu0 %v878
        %1216 = vmatpush1.bf16.msra.mxu0 %v877
        %1217 = vmatprep.subr.bf16.mxu0 %v882
        %1218 = vmatpush1.bf16.msra.mxu0 %v881
        %1219 = vmatprep.subr.bf16.mxu0 %v886
        %1220 = vmatpush1.bf16.msra.mxu0 %v885
        %1221 = vmatprep.subr.bf16.mxu0 %v890
        %1222 = vmatpush1.bf16.msra.mxu0 %v889
        %1223 = vmatprep.subr.bf16.mxu0 %v894
        %1224 = vmatpush1.bf16.msra.mxu0 %v893
        %1225 = vmatprep.mubr.bf16.mxu0 %v432
        %1226 = vmatmul.mubr.bf16.gmra.mrb[0].mxu0 %v431
        %v1227 = vpop.f32.mrb[0].mxu0
        %v1228 = vadd.f32 %v398, %v1227
        %v1229 = vpop.f32.mrb[0].mxu0
        %v1230 = vadd.f32 %v402, %v1229
        %v1231 = vpop.f32.mrb[0].mxu0
        %v1232 = vadd.f32 %v398, %v1231
        %v1233 = vpop.f32.mrb[0].mxu0
        %v1234 = vadd.f32 %v402, %v1233
        %1235 = vmatprep.mubr.bf16.mxu0 %v436
        %1236 = vmatmul.mubr.bf16.gmra.mrb[0].mxu0 %v435
        %v1237 = vpop.f32.mrb[0].mxu0
        %v1238 = vadd.f32 %v398, %v1237
        %v1239 = vpop.f32.mrb[0].mxu0
        %v1240 = vadd.f32 %v402, %v1239
        %v1241 = vpop.f32.mrb[0].mxu0
        %v1242 = vadd.f32 %v398, %v1241
        %v1243 = vpop.f32.mrb[0].mxu0
        %v1244 = vadd.f32 %v402, %v1243
        %1245 = vdwg.mxu0
        %1246 = vmatprep.subr.bf16.mxu0 %v898
        %1247 = vmatpush1.bf16.msra.mxu0 %v897
        %1248 = vmatprep.subr.bf16.mxu0 %v902
        %1249 = vmatpush1.bf16.msra.mxu0 %v901
        %1250 = vmatprep.subr.bf16.mxu0 %v906
        %1251 = vmatpush1.bf16.msra.mxu0 %v905
        %1252 = vmatprep.subr.bf16.mxu0 %v910
        %1253 = vmatpush1.bf16.msra.mxu0 %v909
        %1254 = vmatprep.subr.bf16.mxu0 %v914
        %1255 = vmatpush1.bf16.msra.mxu0 %v913
        %1256 = vmatprep.subr.bf16.mxu0 %v918
        %1257 = vmatpush1.bf16.msra.mxu0 %v917
        %1258 = vmatprep.subr.bf16.mxu0 %v922
        %1259 = vmatpush1.bf16.msra.mxu0 %v921
        %1260 = vmatprep.subr.bf16.mxu0 %v926
        %1261 = vmatpush1.bf16.msra.mxu0 %v925
        %1262 = vmatprep.subr.bf16.mxu0 %v930
        %1263 = vmatpush1.bf16.msra.mxu0 %v929
        %1264 = vmatprep.subr.bf16.mxu0 %v934
        %1265 = vmatpush1.bf16.msra.mxu0 %v933
        %1266 = vmatprep.subr.bf16.mxu0 %v938
        %1267 = vmatpush1.bf16.msra.mxu0 %v937
        %1268 = vmatprep.subr.bf16.mxu0 %v942
        %1269 = vmatpush1.bf16.msra.mxu0 %v941
        %1270 = vmatprep.subr.bf16.mxu0 %v946
        %1271 = vmatpush1.bf16.msra.mxu0 %v945
        %1272 = vmatprep.subr.bf16.mxu0 %v950
        %1273 = vmatpush1.bf16.msra.mxu0 %v949
        %1274 = vmatprep.subr.bf16.mxu0 %v954
        %1275 = vmatpush1.bf16.msra.mxu0 %v953
        %1276 = vmatprep.subr.bf16.mxu0 %v958
        %1277 = vmatpush1.bf16.msra.mxu0 %v957
        %1278 = vmatprep.mubr.bf16.mxu0 %v434
        %1279 = vmatmul.mubr.bf16.gmra.mrb[0].mxu0 %v433
        %v1280 = vpop.f32.mrb[0].mxu0
        %v1281 = vadd.f32 %v1228, %v1280
        %v1282 = vpop.f32.mrb[0].mxu0
        %v1283 = vadd.f32 %v1230, %v1282
        %v1284 = vpop.f32.mrb[0].mxu0
        %v1285 = vadd.f32 %v1232, %v1284
        %v1286 = vpop.f32.mrb[0].mxu0
        %v1287 = vadd.f32 %v1234, %v1286
        %1288 = vmatprep.mubr.bf16.mxu0 %v438
        %1289 = vmatmul.mubr.bf16.gmra.mrb[0].mxu0 %v437
        %v1290 = vpop.f32.mrb[0].mxu0
        %v1291 = vadd.f32 %v1238, %v1290
        %v1292 = vpop.f32.mrb[0].mxu0
        %v1293 = vadd.f32 %v1240, %v1292
        %v1294 = vpop.f32.mrb[0].mxu0
        %v1295 = vadd.f32 %v1242, %v1294
        %v1296 = vpop.f32.mrb[0].mxu0
        %v1297 = vadd.f32 %v1244, %v1296
        %1298 = vdwg.mxu0
        %v1299 = vmul.f32 %v1175, %v1175
        %v1300 = vmul.f32 %v1177, %v1177
        %v1301 = vmul.f32 %v1281, %v1281
        %v1302 = vmul.f32 %v1283, %v1283
        %v1303 = vmul.f32 %v1179, %v1179
        %v1304 = vmul.f32 %v1181, %v1181
        %v1305 = vmul.f32 %v1285, %v1285
        %v1306 = vmul.f32 %v1287, %v1287
        %v1307 = vmul.f32 %v1185, %v1185
        %v1308 = vmul.f32 %v1187, %v1187
        %v1309 = vmul.f32 %v1291, %v1291
        %v1310 = vmul.f32 %v1293, %v1293
        %v1311 = vmul.f32 %v1189, %v1189
        %v1312 = vmul.f32 %v1191, %v1191
        %v1313 = vmul.f32 %v1295, %v1295
        %v1314 = vmul.f32 %v1297, %v1297
        %v1315 = vadd.f32 %v1299, %v1300
        %v1316 = vadd.f32 %v1315, %v1301
        %v1317 = vadd.f32 %v1316, %v1302
        %1318 = vadd.xlane.f32.xlu0 %v1317
        %v1319 = vpop.xlane.xlu0 %1318
        %v1320 = vadd.f32 %v1303, %v1304
        %v1321 = vadd.f32 %v1320, %v1305
        %v1322 = vadd.f32 %v1321, %v1306
        %1323 = vadd.xlane.f32.xlu0 %v1322
        %v1324 = vpop.xlane.xlu0 %1323
        %v1325 = vadd.f32 %v1307, %v1308
        %v1326 = vadd.f32 %v1325, %v1309
        %v1327 = vadd.f32 %v1326, %v1310
        %1328 = vadd.xlane.f32.xlu0 %v1327
        %v1329 = vpop.xlane.xlu0 %1328
        %v1330 = vadd.f32 %v1311, %v1312
        %v1331 = vadd.f32 %v1330, %v1313
        %v1332 = vadd.f32 %v1331, %v1314
        %1333 = vadd.xlane.f32.xlu0 %v1332
        %v1334 = vpop.xlane.xlu0 %1333
        %v1335 = vmax.f32 %v1319, 1e-24
        %v1336 = vmax.f32 %v1324, 1e-24
        %v1337 = vmax.f32 %v1329, 1e-24
        %v1338 = vmax.f32 %v1334, 1e-24
        %v1339 = vrsqrt.pop %v1335
        %v1340 = vrsqrt.pop %v1336
        %v1341 = vrsqrt.pop %v1337
        %v1342 = vrsqrt.pop %v1338
        %v1343 = vmul.f32 %v1339, 20.0
        %v1344 = vmul.f32 %v1340, 20.0
        %v1345 = vmul.f32 %v1341, 20.0
        %v1346 = vmul.f32 %v1342, 20.0
        %v1347 = vmul.f32 %v1175, %v1343
        %v1348 = vmul.f32 %v1177, %v1343
        %v1349 = vmul.f32 %v1281, %v1343
        %v1350 = vmul.f32 %v1283, %v1343
        %v1351 = vmul.f32 %v1179, %v1344
        %v1352 = vmul.f32 %v1181, %v1344
        %v1353 = vmul.f32 %v1285, %v1344
        %v1354 = vmul.f32 %v1287, %v1344
        %v1355 = vmul.f32 %v1185, %v1345
        %v1356 = vmul.f32 %v1187, %v1345
        %v1357 = vmul.f32 %v1291, %v1345
        %v1358 = vmul.f32 %v1293, %v1345
        %v1359 = vmul.f32 %v1189, %v1346
        %v1360 = vmul.f32 %v1191, %v1346
        %v1361 = vmul.f32 %v1295, %v1346
        %v1362 = vmul.f32 %v1297, %v1346
        %v1363 = vpack.c.bf16 %v1351, %v1347
        %v1364 = vpack.c.bf16 %v1352, %v1348
        %v1365 = vpack.c.bf16 %v1353, %v1349
        %v1366 = vpack.c.bf16 %v1354, %v1350
        %v1367 = vpack.c.bf16 %v1359, %v1355
        %v1368 = vpack.c.bf16 %v1360, %v1356
        %v1369 = vpack.c.bf16 %v1361, %v1357
        %v1370 = vpack.c.bf16 %v1362, %v1358
        %v1371 = vld [vmem:[#allocation7] sm:$0xf]
        %v1372 = vld [vmem:[#allocation7 + $0x4] sm:$0xf]
        %v1373 = vld [vmem:[#allocation7 + $0x8] sm:$0xf]
        %v1374 = vld [vmem:[#allocation7 + $0xc] sm:$0xf]
        %v1375 = vld [vmem:[#allocation7 + $0x10] sm:$0xf]
        %v1376 = vld [vmem:[#allocation7 + $0x14] sm:$0xf]
        %v1377 = vld [vmem:[#allocation7 + $0x18] sm:$0xf]
        %v1378 = vld [vmem:[#allocation7 + $0x1c] sm:$0xf]
        %v1379 = vld [vmem:[#allocation7 + $0x20] sm:$0xf]
        %v1380 = vld [vmem:[#allocation7 + $0x24] sm:$0xf]
        %v1381 = vld [vmem:[#allocation7 + $0x28] sm:$0xf]
        %v1382 = vld [vmem:[#allocation7 + $0x2c] sm:$0xf]
        %v1383 = vld [vmem:[#allocation7 + $0x30] sm:$0xf]
        %v1384 = vld [vmem:[#allocation7 + $0x34] sm:$0xf]
        %v1385 = vld [vmem:[#allocation7 + $0x38] sm:$0xf]
        %v1386 = vld [vmem:[#allocation7 + $0x3c] sm:$0xf]
        %v1387 = vld [vmem:[#allocation7 + $0x40] sm:$0xf]
        %v1388 = vld [vmem:[#allocation7 + $0x44] sm:$0xf]
        %v1389 = vld [vmem:[#allocation7 + $0x48] sm:$0xf]
        %v1390 = vld [vmem:[#allocation7 + $0x4c] sm:$0xf]
        %v1391 = vld [vmem:[#allocation7 + $0x50] sm:$0xf]
        %v1392 = vld [vmem:[#allocation7 + $0x54] sm:$0xf]
        %v1393 = vld [vmem:[#allocation7 + $0x58] sm:$0xf]
        %v1394 = vld [vmem:[#allocation7 + $0x5c] sm:$0xf]
        %v1395 = vld [vmem:[#allocation7 + $0x60] sm:$0xf]
        %v1396 = vld [vmem:[#allocation7 + $0x64] sm:$0xf]
        %v1397 = vld [vmem:[#allocation7 + $0x68] sm:$0xf]
        %v1398 = vld [vmem:[#allocation7 + $0x6c] sm:$0xf]
        %v1399 = vld [vmem:[#allocation7 + $0x70] sm:$0xf]
        %v1400 = vld [vmem:[#allocation7 + $0x74] sm:$0xf]
        %v1401 = vld [vmem:[#allocation7 + $0x78] sm:$0xf]
        %v1402 = vld [vmem:[#allocation7 + $0x7c] sm:$0xf]
        %v1403 = vld [vmem:[#allocation7 + $0x80] sm:$0xf]
        %v1404 = vld [vmem:[#allocation7 + $0x84] sm:$0xf]
        %v1405 = vld [vmem:[#allocation7 + $0x88] sm:$0xf]
        %v1406 = vld [vmem:[#allocation7 + $0x8c] sm:$0xf]
        %v1407 = vld [vmem:[#allocation7 + $0x90] sm:$0xf]
        %v1408 = vld [vmem:[#allocation7 + $0x94] sm:$0xf]
        %v1409 = vld [vmem:[#allocation7 + $0x98] sm:$0xf]
        %v1410 = vld [vmem:[#allocation7 + $0x9c] sm:$0xf]
        %v1411 = vld [vmem:[#allocation7 + $0xa0] sm:$0xf]
        %v1412 = vld [vmem:[#allocation7 + $0xa4] sm:$0xf]
        %v1413 = vld [vmem:[#allocation7 + $0xa8] sm:$0xf]
        %v1414 = vld [vmem:[#allocation7 + $0xac] sm:$0xf]
        %v1415 = vld [vmem:[#allocation7 + $0xb0] sm:$0xf]
        %v1416 = vld [vmem:[#allocation7 + $0xb4] sm:$0xf]
        %v1417 = vld [vmem:[#allocation7 + $0xb8] sm:$0xf]
        %v1418 = vld [vmem:[#allocation7 + $0xbc] sm:$0xf]
        %v1419 = vld [vmem:[#allocation7 + $0xc0] sm:$0xf]
        %v1420 = vld [vmem:[#allocation7 + $0xc4] sm:$0xf]
        %v1421 = vld [vmem:[#allocation7 + $0xc8] sm:$0xf]
        %v1422 = vld [vmem:[#allocation7 + $0xcc] sm:$0xf]
        %v1423 = vld [vmem:[#allocation7 + $0xd0] sm:$0xf]
        %v1424 = vld [vmem:[#allocation7 + $0xd4] sm:$0xf]
        %v1425 = vld [vmem:[#allocation7 + $0xd8] sm:$0xf]
        %v1426 = vld [vmem:[#allocation7 + $0xdc] sm:$0xf]
        %v1427 = vld [vmem:[#allocation7 + $0xe0] sm:$0xf]
        %v1428 = vld [vmem:[#allocation7 + $0xe4] sm:$0xf]
        %v1429 = vld [vmem:[#allocation7 + $0xe8] sm:$0xf]
        %v1430 = vld [vmem:[#allocation7 + $0xec] sm:$0xf]
        %v1431 = vld [vmem:[#allocation7 + $0xf0] sm:$0xf]
        %v1432 = vld [vmem:[#allocation7 + $0xf4] sm:$0xf]
        %v1433 = vld [vmem:[#allocation7 + $0xf8] sm:$0xf]
        %v1434 = vld [vmem:[#allocation7 + $0xfc] sm:$0xf]
        %v1499 = vunpack.c.l.b16 %v1371
        %v1500 = vunpack.c.l.b16 %v1372
        %v1501 = vunpack.c.l.b16 %v1373
        %v1502 = vunpack.c.l.b16 %v1374
        %v1503 = vunpack.c.l.b16 %v1375
        %v1504 = vunpack.c.l.b16 %v1376
        %v1505 = vunpack.c.l.b16 %v1377
        %v1506 = vunpack.c.l.b16 %v1378
        %v1507 = vunpack.c.l.b16 %v1379
        %v1508 = vunpack.c.l.b16 %v1380
        %v1509 = vunpack.c.l.b16 %v1381
        %v1510 = vunpack.c.l.b16 %v1382
        %v1511 = vunpack.c.l.b16 %v1383
        %v1512 = vunpack.c.l.b16 %v1384
        %v1513 = vunpack.c.l.b16 %v1385
        %v1514 = vunpack.c.l.b16 %v1386
        %v1515 = vunpack.c.l.b16 %v1387
        %v1516 = vunpack.c.l.b16 %v1388
        %v1517 = vunpack.c.l.b16 %v1389
        %v1518 = vunpack.c.l.b16 %v1390
        %v1519 = vunpack.c.l.b16 %v1391
        %v1520 = vunpack.c.l.b16 %v1392
        %v1521 = vunpack.c.l.b16 %v1393
        %v1522 = vunpack.c.l.b16 %v1394
        %v1523 = vunpack.c.l.b16 %v1395
        %v1524 = vunpack.c.l.b16 %v1396
        %v1525 = vunpack.c.l.b16 %v1397
        %v1526 = vunpack.c.l.b16 %v1398
        %v1527 = vunpack.c.l.b16 %v1399
        %v1528 = vunpack.c.l.b16 %v1400
        %v1529 = vunpack.c.l.b16 %v1401
        %v1530 = vunpack.c.l.b16 %v1402
        %v1531 = vunpack.c.l.b16 %v1403
        %v1532 = vunpack.c.l.b16 %v1404
        %v1533 = vunpack.c.l.b16 %v1405
        %v1534 = vunpack.c.l.b16 %v1406
        %v1535 = vunpack.c.l.b16 %v1407
        %v1536 = vunpack.c.l.b16 %v1408
        %v1537 = vunpack.c.l.b16 %v1409
        %v1538 = vunpack.c.l.b16 %v1410
        %v1539 = vunpack.c.l.b16 %v1411
        %v1540 = vunpack.c.l.b16 %v1412
        %v1541 = vunpack.c.l.b16 %v1413
        %v1542 = vunpack.c.l.b16 %v1414
        %v1543 = vunpack.c.l.b16 %v1415
        %v1544 = vunpack.c.l.b16 %v1416
        %v1545 = vunpack.c.l.b16 %v1417
        %v1546 = vunpack.c.l.b16 %v1418
        %v1547 = vunpack.c.l.b16 %v1419
        %v1548 = vunpack.c.l.b16 %v1420
        %v1549 = vunpack.c.l.b16 %v1421
        %v1550 = vunpack.c.l.b16 %v1422
        %v1551 = vunpack.c.l.b16 %v1423
        %v1552 = vunpack.c.l.b16 %v1424
        %v1553 = vunpack.c.l.b16 %v1425
        %v1554 = vunpack.c.l.b16 %v1426
        %v1555 = vunpack.c.l.b16 %v1427
        %v1556 = vunpack.c.l.b16 %v1428
        %v1557 = vunpack.c.l.b16 %v1429
        %v1558 = vunpack.c.l.b16 %v1430
        %v1559 = vunpack.c.l.b16 %v1431
        %v1560 = vunpack.c.l.b16 %v1432
        %v1561 = vunpack.c.l.b16 %v1433
        %v1562 = vunpack.c.l.b16 %v1434
        %v1563 = vpack.c.b16 %v1500, %v1499
        %v1564 = vpack.c.b16 %v1502, %v1501
        %v1565 = vpack.c.b16 %v1504, %v1503
        %v1566 = vpack.c.b16 %v1506, %v1505
        %v1567 = vpack.c.b16 %v1508, %v1507
        %v1568 = vpack.c.b16 %v1510, %v1509
        %v1569 = vpack.c.b16 %v1512, %v1511
        %v1570 = vpack.c.b16 %v1514, %v1513
        %v1571 = vpack.c.b16 %v1516, %v1515
        %v1572 = vpack.c.b16 %v1518, %v1517
        %v1573 = vpack.c.b16 %v1520, %v1519
        %v1574 = vpack.c.b16 %v1522, %v1521
        %v1575 = vpack.c.b16 %v1524, %v1523
        %v1576 = vpack.c.b16 %v1526, %v1525
        %v1577 = vpack.c.b16 %v1528, %v1527
        %v1578 = vpack.c.b16 %v1530, %v1529
        %v1579 = vpack.c.b16 %v1532, %v1531
        %v1580 = vpack.c.b16 %v1534, %v1533
        %v1581 = vpack.c.b16 %v1536, %v1535
        %v1582 = vpack.c.b16 %v1538, %v1537
        %v1583 = vpack.c.b16 %v1540, %v1539
        %v1584 = vpack.c.b16 %v1542, %v1541
        %v1585 = vpack.c.b16 %v1544, %v1543
        %v1586 = vpack.c.b16 %v1546, %v1545
        %v1587 = vpack.c.b16 %v1548, %v1547
        %v1588 = vpack.c.b16 %v1550, %v1549
        %v1589 = vpack.c.b16 %v1552, %v1551
        %v1590 = vpack.c.b16 %v1554, %v1553
        %v1591 = vpack.c.b16 %v1556, %v1555
        %v1592 = vpack.c.b16 %v1558, %v1557
        %v1593 = vpack.c.b16 %v1560, %v1559
        %v1594 = vpack.c.b16 %v1562, %v1561
        %1627 = vmatprep.subr.bf16.mxu0 0
        %1628 = vmatpush1.bf16.msra.mxu0 %v1563
        %1629 = vmatprep.subr.bf16.mxu0 0
        %1630 = vmatpush1.bf16.msra.mxu0 %v1564
        %1631 = vmatprep.subr.bf16.mxu0 0
        %1632 = vmatpush1.bf16.msra.mxu0 %v1565
        %1633 = vmatprep.subr.bf16.mxu0 0
        %1634 = vmatpush1.bf16.msra.mxu0 %v1566
        %1635 = vmatprep.subr.bf16.mxu0 0
        %1636 = vmatpush1.bf16.msra.mxu0 %v1567
        %1637 = vmatprep.subr.bf16.mxu0 0
        %1638 = vmatpush1.bf16.msra.mxu0 %v1568
        %1639 = vmatprep.subr.bf16.mxu0 0
        %1640 = vmatpush1.bf16.msra.mxu0 %v1569
        %1641 = vmatprep.subr.bf16.mxu0 0
        %1642 = vmatpush1.bf16.msra.mxu0 %v1570
        %1643 = vmatprep.subr.bf16.mxu0 0
        %1644 = vmatpush1.bf16.msra.mxu0 %v1571
        %1645 = vmatprep.subr.bf16.mxu0 0
        %1646 = vmatpush1.bf16.msra.mxu0 %v1572
        %1647 = vmatprep.subr.bf16.mxu0 0
        %1648 = vmatpush1.bf16.msra.mxu0 %v1573
        %1649 = vmatprep.subr.bf16.mxu0 0
        %1650 = vmatpush1.bf16.msra.mxu0 %v1574
        %1651 = vmatprep.subr.bf16.mxu0 0
        %1652 = vmatpush1.bf16.msra.mxu0 %v1575
        %1653 = vmatprep.subr.bf16.mxu0 0
        %1654 = vmatpush1.bf16.msra.mxu0 %v1576
        %1655 = vmatprep.subr.bf16.mxu0 0
        %1656 = vmatpush1.bf16.msra.mxu0 %v1577
        %1657 = vmatprep.subr.bf16.mxu0 0
        %1658 = vmatpush1.bf16.msra.mxu0 %v1578
        %1659 = vmatprep.mubr.bf16.mxu0 %v1364
        %1660 = vmatmul.mubr.bf16.gmra.mrb[0].mxu0 %v1363
        %v1661 = vpop.f32.mrb[0].mxu0
        %v1662 = vadd.f32 0.0, %v1661
        %v1663 = vpop.f32.mrb[0].mxu0
        %v1664 = vpop.f32.mrb[0].mxu0
        %v1665 = vadd.f32 0.0, %v1664
        %v1666 = vpop.f32.mrb[0].mxu0
        %1667 = vmatprep.mubr.bf16.mxu0 %v1368
        %1668 = vmatmul.mubr.bf16.gmra.mrb[0].mxu0 %v1367
        %v1669 = vpop.f32.mrb[0].mxu0
        %v1670 = vadd.f32 0.0, %v1669
        %v1671 = vpop.f32.mrb[0].mxu0
        %v1672 = vpop.f32.mrb[0].mxu0
        %v1673 = vadd.f32 0.0, %v1672
        %v1674 = vpop.f32.mrb[0].mxu0
        %1675 = vdwg.mxu0
        %1676 = vmatprep.subr.bf16.mxu0 0
        %1677 = vmatpush1.bf16.msra.mxu0 %v1579
        %1678 = vmatprep.subr.bf16.mxu0 0
        %1679 = vmatpush1.bf16.msra.mxu0 %v1580
        %1680 = vmatprep.subr.bf16.mxu0 0
        %1681 = vmatpush1.bf16.msra.mxu0 %v1581
        %1682 = vmatprep.subr.bf16.mxu0 0
        %1683 = vmatpush1.bf16.msra.mxu0 %v1582
        %1684 = vmatprep.subr.bf16.mxu0 0
        %1685 = vmatpush1.bf16.msra.mxu0 %v1583
        %1686 = vmatprep.subr.bf16.mxu0 0
        %1687 = vmatpush1.bf16.msra.mxu0 %v1584
        %1688 = vmatprep.subr.bf16.mxu0 0
        %1689 = vmatpush1.bf16.msra.mxu0 %v1585
        %1690 = vmatprep.subr.bf16.mxu0 0
        %1691 = vmatpush1.bf16.msra.mxu0 %v1586
        %1692 = vmatprep.subr.bf16.mxu0 0
        %1693 = vmatpush1.bf16.msra.mxu0 %v1587
        %1694 = vmatprep.subr.bf16.mxu0 0
        %1695 = vmatpush1.bf16.msra.mxu0 %v1588
        %1696 = vmatprep.subr.bf16.mxu0 0
        %1697 = vmatpush1.bf16.msra.mxu0 %v1589
        %1698 = vmatprep.subr.bf16.mxu0 0
        %1699 = vmatpush1.bf16.msra.mxu0 %v1590
        %1700 = vmatprep.subr.bf16.mxu0 0
        %1701 = vmatpush1.bf16.msra.mxu0 %v1591
        %1702 = vmatprep.subr.bf16.mxu0 0
        %1703 = vmatpush1.bf16.msra.mxu0 %v1592
        %1704 = vmatprep.subr.bf16.mxu0 0
        %1705 = vmatpush1.bf16.msra.mxu0 %v1593
        %1706 = vmatprep.subr.bf16.mxu0 0
        %1707 = vmatpush1.bf16.msra.mxu0 %v1594
        %1708 = vmatprep.mubr.bf16.mxu0 %v1366
        %1709 = vmatmul.mubr.bf16.gmra.mrb[0].mxu0 %v1365
        %v1710 = vpop.f32.mrb[0].mxu0
        %v1711 = vadd.f32 %v1662, %v1710
        %v1712 = vpop.f32.mrb[0].mxu0
        %v1713 = vpop.f32.mrb[0].mxu0
        %v1714 = vadd.f32 %v1665, %v1713
        %v1715 = vpop.f32.mrb[0].mxu0
        %1716 = vmatprep.mubr.bf16.mxu0 %v1370
        %1717 = vmatmul.mubr.bf16.gmra.mrb[0].mxu0 %v1369
        %v1718 = vpop.f32.mrb[0].mxu0
        %v1719 = vadd.f32 %v1670, %v1718
        %v1720 = vpop.f32.mrb[0].mxu0
        %v1721 = vpop.f32.mrb[0].mxu0
        %v1722 = vadd.f32 %v1673, %v1721
        %v1723 = vpop.f32.mrb[0].mxu0
        %1724 = vdwg.mxu0
        %1725 = vst [vmem:[%s245] sm:$0xff] %v1711
        %1726 = vst [vmem:[%s245 + $0x8] sm:$0xff] %v1714
        %1727 = vst [vmem:[%s245 + $0x10] sm:$0xff] %v1719
        %1728 = vst [vmem:[%s245 + $0x18] sm:$0xff] %v1722
        %s1729 = sand.u32 %s119, 1
        %s1730 = scalar_lea.sflag [#allocation4], %s1729
        %s1731 = sand.u32 %s119, 1
        %s1732 = smul.addr %s1731, 32
        %s1733 = scalar_lea.vmem [#allocation8], %s1732
        // Predicated region
        $region49: #{tpu_custom_call.1} parent=35 // pred_check
          %p1734 = pneg %p129
        $region50: #{tpu_custom_call.1} parent=35 // pred_check_branch
          %1736 = sbr.rel (%p1734) target = $region52
        $region51: #{tpu_custom_call.1} parent=35 // pred_region
          %s1737 = smul.u32 4, %s22
          %s1739 = ssub.s32 512, 512
          %1740 = vsyncadd %s1730, %s1739
          %s1741 = smul.addr %s1737, 128
          %s1742 = scalar_lea.hbm %s4, %s1741
          %s1743 = sshll.u32 %s1733, 4
          %s1744 = int_to_ptr.vmem [resolvable:$true] %s1743
          %1749 = dma.vmem_to_hbm [thread:$0]  %s1744, 512, %s1742, %s1730, 128, 128, 8
        $region52: #{tpu_custom_call.1} parent=35 // pred_fallthru
          _
      $region36: #{tpu_custom_call.1} parent=5 // pred_fallthru
        _
      %p1750 = scmp.le.s32.totalorder 2, %s17
      // Predicated region
      $region53: #{tpu_custom_call.1} parent=5 // pred_check
        %p1751 = pneg %p1750
      $region54: #{tpu_custom_call.1} parent=5 // pred_check_branch
        %1753 = sbr.rel (%p1751) target = $region56
      $region55: #{tpu_custom_call.1} parent=5 // pred_region
        %s1754 = ssub.s32 %s17, 2
        // Predicated region
        $region57: #{tpu_custom_call.1} parent=55 // pred_check
          %p1755 = pneg %p135
        $region58: #{tpu_custom_call.1} parent=55 // pred_check_branch
          %1757 = sbr.rel (%p1755) target = $region60
        $region59: #{tpu_custom_call.1} parent=55 // pred_region
          %s1758 = sand.u32 %s120, 1
          %s1759 = scalar_lea.sflag [#allocation4], %s1758
          %s1760 = sand.u32 %s120, 1
          %s1761 = smul.addr %s1760, 32
          %s1762 = scalar_lea.vmem [#allocation8], %s1761
          %1763 = dma.done %s1759, 512
        $region60: #{tpu_custom_call.1} parent=55 // pred_fallthru
          _
      $region56: #{tpu_custom_call.1} parent=5 // pred_fallthru
        _
    $region6: #{tpu_custom_call.1} parent=1 // loop_footer
      %s21 = sadd.s32 1, %s17
    $region7: #{tpu_custom_call.1} parent=1 // loop_footer_branch
      %16 = sbr.rel target = $region3
    $region8: #{tpu_custom_call.1} parent=1 // loop_exit
      _
    %1764 = vsyncpa [#allocation3], 1
    %s1765 = scalar_lea.sflag [#allocation3], 1
    %1766 = vsyncpa %s1765, 1
    %1767 = vsyncpa [#allocation6], 1
    %1768 = vsyncpa [#allocation4], 1
    %s1769 = scalar_lea.sflag [#allocation4], 1
    %1770 = vsyncpa %s1769, 1

</llo_original>
